<compile_context>
chip_gen: v5e
topology: v5e:2x2
jax: 0.10.0
libtpu: 0.0.40
codegen_flags: <defaults>
</compile_context>

<pallas_src>
import jax
import jax.numpy as jnp
import numpy as np
from jax import lax
from jax.experimental import pallas as pl
from jax.experimental.pallas import tpu as pltpu


def _round_up(x, m):
    return ((x + m - 1) // m) * m


def _make_kernel(*, K, stride, dilation, pad, TL, TLE, Hq, L_out, id_off,
                 use_downsample, compute_dtype):
    """Fused residual-block kernel for one (sample, length-tile) grid point."""
    s, d = stride, dilation

    def kernel(*refs):
        if use_downsample:
            (xm_ref, xh_ref, w1_ref, w2_ref, wd_ref, bn_ref,
             out_ref, xw_ref, h1_ref) = refs
        else:
            (xm_ref, xh_ref, w1_ref, w2_ref, bn_ref,
             out_ref, xw_ref, h1_ref) = refs
            wd_ref = None

        t = pl.program_id(1)

        bn = bn_ref[...]                              # (4, Cout) f32
        s1, b1 = bn[0:1, :], bn[1:2, :]
        s2, b2 = bn[2:3, :], bn[3:4, :]

        # ---- assemble the contiguous phase-major x window: main ++ halo ------
        xw_ref[:, pl.ds(0, TL), :] = xm_ref[...]
        xw_ref[:, pl.ds(TL, Hq), :] = xh_ref[...]

        def xrows(off, rows):
            # `off` is a static offset in padded-x row coordinates; row i of the
            # result is padded-x row off + s*i.  The phase-major layout turns the
            # stride-s access into a unit-stride sublane read.
            return xw_ref[off % s, pl.ds(off // s, rows), :]

        # ---- conv1: im2col (lane-concat of K taps) -> one MXU matmul ----------
        taps = [xrows(k * d, TLE) for k in range(K)]
        cols1 = taps[0] if K == 1 else jnp.concatenate(taps, axis=1)
        acc1 = jnp.dot(cols1, w1_ref[...], preferred_element_type=jnp.float32)

        # ---- bn1 + relu (f32); zero rows whose global conv1 position is outside
        #      [0, L_out): these are conv2's zero padding / tile-overhang rows.
        h1 = jnp.maximum(acc1 * s1 + b1, 0.0)
        g = t * TL - pad + lax.broadcasted_iota(jnp.int32, (TLE, 1), 0)
        h1 = jnp.where((g >= 0) & (g < L_out), h1, 0.0)
        h1_ref[...] = h1.astype(compute_dtype)

        # ---- conv2 (stride 1): one [TL, K*Cout] @ [K*Cout, Cout] matmul -------
        taps2 = [h1_ref[pl.ds(k * d, TL), :] for k in range(K)]
        cols2 = taps2[0] if K == 1 else jnp.concatenate(taps2, axis=1)
        acc2 = jnp.dot(cols2, w2_ref[...], preferred_element_type=jnp.float32)
        h2 = acc2 * s2 + b2

        # ---- identity path (read from the already-resident window) ------------
        if use_downsample:
            ident = jnp.dot(xrows(id_off, TL), wd_ref[...],
                            preferred_element_type=jnp.float32)
        else:
            ident = xrows(id_off, TL).astype(jnp.float32)

        res = jnp.maximum(h2 + ident, 0.0)            # [TL, Cout] f32
        # lane-dense NCL store: transpose [TL, Cout] -> [Cout, TL]
        out_ref[...] = jnp.transpose(res, (1, 0)).astype(out_ref.dtype)

    return kernel


def xylophone_residual_block(x_ncl, params, *, kernel_size, stride, dilation=1,
                             tile_l=2048, compute_dtype=jnp.bfloat16,
                             out_dtype=jnp.float32):
    """Forward pass of XylophoneResidualBlock.  x_ncl: [N, Cin, L] (PyTorch NCL)."""
    w1 = jnp.asarray(params["w1"])                    # [Cout, Cin, K]
    w2 = jnp.asarray(params["w2"])                    # [Cout, Cout, K]
    N, Cin, L = x_ncl.shape
    Cout = w1.shape[0]
    K, s, d = kernel_size, stride, dilation

    assert K % 2 == 1, "odd kernel_size required for 'same'-length conv2"
    pad = d * (K // 2)
    L_out = (L + 2 * pad - d * (K - 1) - 1) // s + 1
    use_ds = s > 1
    if not use_ds:
        assert Cin == Cout, "identity add requires inplanes == planes when stride == 1"

    # ---- output-length tiling; TL multiple of 128 => lane-dense NCL stores ----
    TL = max(128, min(_round_up(tile_l, 128), _round_up(L_out, 128)))
    nT = -(-L_out // TL)
    L_out_pad = nT * TL
    TLE = _round_up(TL + 2 * pad, 8)                  # conv1 rows per tile (incl. conv2 halo)

    # ---- identity-path offset (replicates module.get_pad slicing) -------------
    downsize = (L_out - 1) * s + 1
    left = (L - downsize) // 2
    PadL = pad * (1 + s)                              # left zeros so all window reads are in-bounds
    id_off = left + PadL                              # (== 2*pad when stride == 1)

    # ---- per-phase (stride-deinterleaved) halo geometry ------------------------
    a_max = ((K - 1) * d) // s
    Wq = max(a_max + TLE, id_off // s + TL)           # sub-rows needed per phase per tile
    Hq = max(8, pl.next_power_of_2(max(Wq - TL, 1)))  # power-of-two halo, divides TL
    assert Hq <= min(TL, 128) and TL % Hq == 0, "conv halo too large for this tiling"
    Lq = nT * TL + Hq                                 # per-phase padded length
    L_tot = s * Lq
    PadR = L_tot - PadL - L
    assert PadR >= 0

    # ---- single padded, phase-major bf16 copy of x (the only x stream) --------
    x_nlc = jnp.transpose(x_ncl, (0, 2, 1)).astype(compute_dtype)       # [N, L, Cin]
    x_pad = jnp.pad(x_nlc, ((0, 0), (PadL, PadR), (0, 0)))              # [N, L_tot, Cin]
    x_d = jnp.transpose(x_pad.reshape(N, Lq, s, Cin), (0, 2, 1, 3))     # [N, s, Lq, Cin]

    # ---- weights in im2col form; folded-BN packed into one (4, Cout) stream ---
    w1c = jnp.transpose(w1, (2, 1, 0)).reshape(K * Cin, Cout).astype(compute_dtype)
    w2c = jnp.transpose(w2, (2, 1, 0)).reshape(K * Cout, Cout).astype(compute_dtype)
    bn = jnp.stack([jnp.asarray(params["bn1_scale"]), jnp.asarray(params["bn1_bias"]),
                    jnp.asarray(params["bn2_scale"]), jnp.asarray(params["bn2_bias"])],
                   axis=0).astype(jnp.float32)                          # [4, Cout]

    blk_halo = TL // Hq
    in_specs = [
        pl.BlockSpec((None, s, TL, Cin), lambda n, t: (n, 0, t, 0)),               # x main
        pl.BlockSpec((None, s, Hq, Cin), lambda n, t: (n, 0, (t + 1) * blk_halo, 0)),  # x halo
        pl.BlockSpec((K * Cin, Cout), lambda n, t: (0, 0)),                        # w1 (im2col)
        pl.BlockSpec((K * Cout, Cout), lambda n, t: (0, 0)),                       # w2 (im2col)
    ]
    inputs = [x_d, x_d, w1c, w2c]
    if use_ds:
        wdc = jnp.transpose(jnp.asarray(params["wd"])[:, :, 0], (1, 0)).astype(compute_dtype)
        in_specs.append(pl.BlockSpec((Cin, Cout), lambda n, t: (0, 0)))            # wd (1x1)
        inputs.append(wdc)
    in_specs.append(pl.BlockSpec((4, Cout), lambda n, t: (0, 0)))                  # packed BN
    inputs.append(bn)

    kernel = _make_kernel(K=K, stride=s, dilation=d, pad=pad, TL=TL, TLE=TLE,
                          Hq=Hq, L_out=L_out, id_off=id_off,
                          use_downsample=use_ds, compute_dtype=compute_dtype)

    grid_spec = pltpu.PrefetchScalarGridSpec(
        num_scalar_prefetch=0,
        grid=(N, nT),
        in_specs=in_specs,
        out_specs=pl.BlockSpec((None, Cout, TL), lambda n, t: (n, 0, t)),
        scratch_shapes=[pltpu.VMEM((s, TL + Hq, Cin), compute_dtype),   # assembled x window
                        pltpu.VMEM((TLE, Cout), compute_dtype)],        # h1 intermediate
    )

    out = pl.pallas_call(
        kernel,
        out_shape=jax.ShapeDtypeStruct((N, Cout, L_out_pad), out_dtype),
        grid_spec=grid_spec,
        compiler_params=pltpu.CompilerParams(
            dimension_semantics=("parallel", "parallel"),
            vmem_limit_bytes=48 * 1024 * 1024),
    )(*inputs)

    if L_out_pad != L_out:
        out = out[:, :, :L_out]
    return out                                                           # [N, Cout, L_out] (NCL)


# ------------------------------ pure-JAX reference ---------------------------
def ref_forward(x, p, *, kernel_size, stride, dilation):
    K = kernel_size
    pad = dilation * (K // 2)
    dn = ("NCH", "OIH", "NCH")
    prec = lax.Precision.HIGHEST
    out = lax.conv_general_dilated(x, p["w1"], (stride,), [(pad, pad)],
                                   rhs_dilation=(dilation,),
                                   dimension_numbers=dn, precision=prec)
    out = out * p["bn1_scale"][None, :, None] + p["bn1_bias"][None, :, None]
    out = jnp.maximum(out, 0.0)
    out = lax.conv_general_dilated(out, p["w2"], (1,), [(pad, pad)],
                                   rhs_dilation=(dilation,),
                                   dimension_numbers=dn, precision=prec)
    out = out * p["bn2_scale"][None, :, None] + p["bn2_bias"][None, :, None]
    if stride > 1:
        L = x.shape[-1]
        L_out = out.shape[-1]
        downsize = (L_out - 1) * stride + 1
        diff = L - downsize
        left = diff // 2
        x_sl = x[:, :, left: L - (diff - left)]
        identity = lax.conv_general_dilated(x_sl, p["wd"], (stride,), [(0, 0)],
                                            dimension_numbers=dn, precision=prec)
    else:
        identity = x
    return jnp.maximum(out + identity, 0.0)


if __name__ == "__main__":
    eps = 1e-5

    def bn_params(kg, kb, km, kv, C):
        gamma = 1.0 + 0.1 * jax.random.normal(kg, (C,), jnp.float32)
        beta = 0.05 * jax.random.normal(kb, (C,), jnp.float32)
        mean = 0.1 * jax.random.normal(km, (C,), jnp.float32)
        var = jax.random.uniform(kv, (C,), jnp.float32, minval=0.5, maxval=1.5)
        scale = gamma / jnp.sqrt(var + eps)
        bias = beta - mean * scale
        return scale, bias

    def make_case(key, N, Cin, Cout, L, K, stride):
        ks = jax.random.split(key, 12)
        bn1_scale, bn1_bias = bn_params(ks[2], ks[3], ks[4], ks[5], Cout)
        bn2_scale, bn2_bias = bn_params(ks[6], ks[7], ks[8], ks[9], Cout)
        params = {
            "w1": 0.1 * jax.random.normal(ks[0], (Cout, Cin, K), jnp.float32),
            "w2": 0.1 * jax.random.normal(ks[1], (Cout, Cout, K), jnp.float32),
            "bn1_scale": bn1_scale, "bn1_bias": bn1_bias,
            "bn2_scale": bn2_scale, "bn2_bias": bn2_bias,
        }
        if stride > 1:
            params["wd"] = 0.1 * jax.random.normal(ks[10], (Cout, Cin, 1), jnp.float32)
        x = jax.random.normal(ks[11], (N, Cin, L), jnp.float32)
        return x, params

    key = jax.random.PRNGKey(0)
    k1, k2 = jax.random.split(key)

    # Tolerances: kernel uses a bf16 x stream, bf16 MXU operands and a bf16 h1
    # intermediate (f32 accumulation); the reference is full-f32 HIGHEST XLA convs.
    RTOL, ATOL = 4e-2, 4e-2

    # case 1: strided block with 1x1-conv downsample (inplanes=8 -> planes=16)
    x, params = make_case(k1, N=2, Cin=8, Cout=16, L=16, K=3, stride=2)
    out = jax.block_until_ready(
        xylophone_residual_block(x, params, kernel_size=3, stride=2, dilation=1))
    ref = ref_forward(x, params, kernel_size=3, stride=2, dilation=1)
    np.testing.assert_allclose(np.asarray(out), np.asarray(ref), rtol=RTOL, atol=ATOL)

    # case 2: stride-1 block with plain identity (inplanes == planes == 16)
    x, params = make_case(k2, N=2, Cin=16, Cout=16, L=16, K=3, stride=1)
    out = jax.block_until_ready(
        xylophone_residual_block(x, params, kernel_size=3, stride=1, dilation=1))
    ref = ref_forward(x, params, kernel_size=3, stride=1, dilation=1)
    np.testing.assert_allclose(np.asarray(out), np.asarray(ref), rtol=RTOL, atol=ATOL)

    print("KERNEL_OK")
</pallas_src>

<mosaic_0001>
module attributes {stable_mosaic.version = 11 : i64} {
  func.func @kernel(%arg0: i32, %arg1: i32, %arg2: memref<1x2x128x8xbf16, #tpu.memory_space<vmem>>, %arg3: memref<1x2x16x8xbf16, #tpu.memory_space<vmem>>, %arg4: memref<24x16xbf16, #tpu.memory_space<vmem>>, %arg5: memref<48x16xbf16, #tpu.memory_space<vmem>>, %arg6: memref<8x16xbf16, #tpu.memory_space<vmem>>, %arg7: memref<4x16xf32, #tpu.memory_space<vmem>>, %arg8: memref<1x16x128xf32, #tpu.memory_space<vmem>>, %arg9: memref<2x144x8xbf16, #tpu.memory_space<vmem>>, %arg10: memref<136x16xbf16, #tpu.memory_space<vmem>>) attributes {dimension_semantics = [#tpu.dimension_semantics<parallel>, #tpu.dimension_semantics<parallel>], iteration_bounds = array<i64: 2, 1>, scalar_prefetch = 0 : i64, scratch_operands = 2 : i64, tpu.core_type = #tpu.core_type<tc>, window_params = [{transform_indices = @transform_0, window_bounds = array<i64: 1, 2, 128, 8>}, {transform_indices = @transform_1, window_bounds = array<i64: 1, 2, 16, 8>}, {pipeline_mode = #tpu.pipeline_mode<synchronous>, transform_indices = @transform_2, window_bounds = array<i64: 24, 16>}, {pipeline_mode = #tpu.pipeline_mode<synchronous>, transform_indices = @transform_3, window_bounds = array<i64: 48, 16>}, {pipeline_mode = #tpu.pipeline_mode<synchronous>, transform_indices = @transform_4, window_bounds = array<i64: 8, 16>}, {pipeline_mode = #tpu.pipeline_mode<synchronous>, transform_indices = @transform_5, window_bounds = array<i64: 4, 16>}, {transform_indices = @transform_6, window_bounds = array<i64: 1, 16, 128>}]} {
    %c0 = arith.constant 0 : index
    %c0_0 = arith.constant 0 : index
    %0 = vector.load %arg7[%c0, %c0_0] : memref<4x16xf32, #tpu.memory_space<vmem>>, vector<4x16xf32>
    %1 = vector.extract_strided_slice %0 {offsets = [0, 0], sizes = [1, 16], strides = [1, 1]} : vector<4x16xf32> to vector<1x16xf32>
    %2 = vector.extract_strided_slice %0 {offsets = [1, 0], sizes = [1, 16], strides = [1, 1]} : vector<4x16xf32> to vector<1x16xf32>
    %3 = vector.extract_strided_slice %0 {offsets = [2, 0], sizes = [1, 16], strides = [1, 1]} : vector<4x16xf32> to vector<1x16xf32>
    %4 = vector.extract_strided_slice %0 {offsets = [3, 0], sizes = [1, 16], strides = [1, 1]} : vector<4x16xf32> to vector<1x16xf32>
    %c0_1 = arith.constant 0 : index
    %c0_2 = arith.constant 0 : index
    %c0_3 = arith.constant 0 : index
    %c0_4 = arith.constant 0 : index
    %5 = vector.load %arg2[%c0_1, %c0_2, %c0_3, %c0_4] : memref<1x2x128x8xbf16, #tpu.memory_space<vmem>>, vector<1x2x128x8xbf16>
    %6 = vector.shape_cast %5 : vector<1x2x128x8xbf16> to vector<2x128x8xbf16>
    %c0_5 = arith.constant 0 : index
    %c0_6 = arith.constant 0 : index
    %c0_7 = arith.constant 0 : index
    %7 = vector.load %arg9[%c0_5, %c0_6, %c0_7] : memref<2x144x8xbf16, #tpu.memory_space<vmem>>, vector<2x128x8xbf16>
    tpu.vector_store %arg9[%c0_5, %c0_6, %c0_7], %6 {strides = array<i32>} : memref<2x144x8xbf16, #tpu.memory_space<vmem>>, vector<2x128x8xbf16>,
    %c0_8 = arith.constant 0 : index
    %c0_9 = arith.constant 0 : index
    %c0_10 = arith.constant 0 : index
    %c0_11 = arith.constant 0 : index
    %8 = vector.load %arg3[%c0_8, %c0_9, %c0_10, %c0_11] : memref<1x2x16x8xbf16, #tpu.memory_space<vmem>>, vector<1x2x16x8xbf16>
    %9 = vector.shape_cast %8 : vector<1x2x16x8xbf16> to vector<2x16x8xbf16>
    %c0_12 = arith.constant 0 : index
    %c128 = arith.constant 128 : index
    %c0_13 = arith.constant 0 : index
    %10 = vector.load %arg9[%c0_12, %c128, %c0_13] : memref<2x144x8xbf16, #tpu.memory_space<vmem>>, vector<2x16x8xbf16>
    tpu.vector_store %arg9[%c0_12, %c128, %c0_13], %9 {strides = array<i32>} : memref<2x144x8xbf16, #tpu.memory_space<vmem>>, vector<2x16x8xbf16>,
    %c0_14 = arith.constant 0 : index
    %c0_15 = arith.constant 0 : index
    %c0_16 = arith.constant 0 : index
    %11 = vector.load %arg9[%c0_14, %c0_15, %c0_16] : memref<2x144x8xbf16, #tpu.memory_space<vmem>>, vector<1x136x8xbf16>
    %12 = vector.shape_cast %11 : vector<1x136x8xbf16> to vector<136x8xbf16>
    %c1 = arith.constant 1 : index
    %c0_17 = arith.constant 0 : index
    %c0_18 = arith.constant 0 : index
    %13 = vector.load %arg9[%c1, %c0_17, %c0_18] : memref<2x144x8xbf16, #tpu.memory_space<vmem>>, vector<1x136x8xbf16>
    %14 = vector.shape_cast %13 : vector<1x136x8xbf16> to vector<136x8xbf16>
    %c0_19 = arith.constant 0 : index
    %c1_20 = arith.constant 1 : index
    %c0_21 = arith.constant 0 : index
    %15 = vector.load %arg9[%c0_19, %c1_20, %c0_21] : memref<2x144x8xbf16, #tpu.memory_space<vmem>>, vector<1x136x8xbf16>
    %16 = vector.shape_cast %15 : vector<1x136x8xbf16> to vector<136x8xbf16>
    %17 = tpu.concatenate %12, %14, %16 in 1 : vector<136x8xbf16>, vector<136x8xbf16>, vector<136x8xbf16> -> vector<136x24xbf16>
    %c0_22 = arith.constant 0 : index
    %c0_23 = arith.constant 0 : index
    %18 = vector.load %arg4[%c0_22, %c0_23] : memref<24x16xbf16, #tpu.memory_space<vmem>>, vector<24x16xbf16>
    %cst = arith.constant dense<0.000000e+00> : vector<136x16xf32>
    %19 = tpu.matmul %17, %18, %cst {dimension_numbers = #tpu.dot_dimension_numbers<[1], [0], [0], [1], [0, 0, 1, 1], [], []>} : vector<136x24xbf16>, vector<24x16xbf16>, vector<136x16xf32> -> vector<136x16xf32>
    %20 = vector.broadcast %1 : vector<1x16xf32> to vector<136x16xf32>
    %21 = arith.mulf %19, %20 : vector<136x16xf32>
    %22 = vector.broadcast %2 : vector<1x16xf32> to vector<136x16xf32>
    %23 = arith.addf %21, %22 : vector<136x16xf32>
    %cst_24 = arith.constant 0.000000e+00 : f32
    %24 = vector.broadcast %cst_24 : f32 to vector<136x16xf32>
    %25 = arith.maximumf %23, %24 : vector<136x16xf32>
    %c128_i32 = arith.constant 128 : i32
    %26 = arith.muli %arg1, %c128_i32 : i32
    %c1_i32 = arith.constant 1 : i32
    %27 = arith.subi %26, %c1_i32 : i32
    %28 = tpu.iota {dimensions = array<i32: 0>} : vector<136x1xi32>
    %29 = vector.broadcast %27 : i32 to vector<136x1xi32>
    %30 = arith.addi %29, %28 : vector<136x1xi32>
    %c0_i32 = arith.constant 0 : i32
    %31 = vector.broadcast %c0_i32 : i32 to vector<136x1xi32>
    %32 = arith.cmpi sge, %30, %31 : vector<136x1xi32>
    %c8_i32 = arith.constant 8 : i32
    %33 = vector.broadcast %c8_i32 : i32 to vector<136x1xi32>
    %34 = arith.cmpi slt, %30, %33 : vector<136x1xi32>
    %35 = arith.andi %32, %34 : vector<136x1xi1>
    %cst_25 = arith.constant 0.000000e+00 : f32
    %36 = vector.shape_cast %35 : vector<136x1xi1> to vector<136x1xi1>
    %37 = vector.broadcast %36 : vector<136x1xi1> to vector<136x16xi1>
    %38 = vector.broadcast %cst_25 : f32 to vector<136x16xf32>
    %39 = arith.select %37, %25, %38 : vector<136x16xi1>, vector<136x16xf32>
    %40 = arith.truncf %39 : vector<136x16xf32> to vector<136x16xbf16>
    %c0_26 = arith.constant 0 : index
    %c0_27 = arith.constant 0 : index
    %41 = vector.load %arg10[%c0_26, %c0_27] : memref<136x16xbf16, #tpu.memory_space<vmem>>, vector<136x16xbf16>
    tpu.vector_store %arg10[%c0_26, %c0_27], %40 {strides = array<i32>} : memref<136x16xbf16, #tpu.memory_space<vmem>>, vector<136x16xbf16>,
    %c0_28 = arith.constant 0 : index
    %c0_29 = arith.constant 0 : index
    %42 = vector.load %arg10[%c0_28, %c0_29] : memref<136x16xbf16, #tpu.memory_space<vmem>>, vector<128x16xbf16>
    %c1_30 = arith.constant 1 : index
    %c0_31 = arith.constant 0 : index
    %43 = vector.load %arg10[%c1_30, %c0_31] : memref<136x16xbf16, #tpu.memory_space<vmem>>, vector<128x16xbf16>
    %c2 = arith.constant 2 : index
    %c0_32 = arith.constant 0 : index
    %44 = vector.load %arg10[%c2, %c0_32] : memref<136x16xbf16, #tpu.memory_space<vmem>>, vector<128x16xbf16>
    %45 = tpu.concatenate %42, %43, %44 in 1 : vector<128x16xbf16>, vector<128x16xbf16>, vector<128x16xbf16> -> vector<128x48xbf16>
    %c0_33 = arith.constant 0 : index
    %c0_34 = arith.constant 0 : index
    %46 = vector.load %arg5[%c0_33, %c0_34] : memref<48x16xbf16, #tpu.memory_space<vmem>>, vector<48x16xbf16>
    %cst_35 = arith.constant dense<0.000000e+00> : vector<128x16xf32>
    %47 = tpu.matmul %45, %46, %cst_35 {dimension_numbers = #tpu.dot_dimension_numbers<[1], [0], [0], [1], [0, 0, 1, 1], [], []>} : vector<128x48xbf16>, vector<48x16xbf16>, vector<128x16xf32> -> vector<128x16xf32>
    %48 = vector.broadcast %3 : vector<1x16xf32> to vector<128x16xf32>
    %49 = arith.mulf %47, %48 : vector<128x16xf32>
    %50 = vector.broadcast %4 : vector<1x16xf32> to vector<128x16xf32>
    %51 = arith.addf %49, %50 : vector<128x16xf32>
    %c1_36 = arith.constant 1 : index
    %c1_37 = arith.constant 1 : index
    %c0_38 = arith.constant 0 : index
    %52 = vector.load %arg9[%c1_36, %c1_37, %c0_38] : memref<2x144x8xbf16, #tpu.memory_space<vmem>>, vector<1x128x8xbf16>
    %53 = vector.shape_cast %52 : vector<1x128x8xbf16> to vector<128x8xbf16>
    %c0_39 = arith.constant 0 : index
    %c0_40 = arith.constant 0 : index
    %54 = vector.load %arg6[%c0_39, %c0_40] : memref<8x16xbf16, #tpu.memory_space<vmem>>, vector<8x16xbf16>
    %cst_41 = arith.constant dense<0.000000e+00> : vector<128x16xf32>
    %55 = tpu.matmul %53, %54, %cst_41 {dimension_numbers = #tpu.dot_dimension_numbers<[1], [0], [0], [1], [0, 0, 1, 1], [], []>} : vector<128x8xbf16>, vector<8x16xbf16>, vector<128x16xf32> -> vector<128x16xf32>
    %56 = arith.addf %51, %55 : vector<128x16xf32>
    %cst_42 = arith.constant 0.000000e+00 : f32
    %57 = vector.broadcast %cst_42 : f32 to vector<128x16xf32>
    %58 = arith.maximumf %56, %57 : vector<128x16xf32>
    %59 = tpu.transpose %58, [1, 0] : vector<128x16xf32> -> vector<16x128xf32>
    %c0_43 = arith.constant 0 : index
    %c0_44 = arith.constant 0 : index
    %c0_45 = arith.constant 0 : index
    %60 = vector.load %arg8[%c0_43, %c0_44, %c0_45] : memref<1x16x128xf32, #tpu.memory_space<vmem>>, vector<1x16x128xf32>
    %61 = vector.shape_cast %60 : vector<1x16x128xf32> to vector<16x128xf32>
    %62 = vector.shape_cast %59 : vector<16x128xf32> to vector<1x16x128xf32>
    tpu.vector_store %arg8[%c0_43, %c0_44, %c0_45], %62 {strides = array<i32>} : memref<1x16x128xf32, #tpu.memory_space<vmem>>, vector<1x16x128xf32>,
    return
  }
  func.func @transform_0(%arg0: i32, %arg1: i32) -> (i32, i32, i32, i32) {
    %c0_i32 = arith.constant 0 : i32
    %c0_i32_0 = arith.constant 0 : i32
    %c0_i32_1 = arith.constant 0 : i32
    return %arg0, %c0_i32, %arg1, %c0_i32_0 : i32, i32, i32, i32
  }
  func.func @transform_1(%arg0: i32, %arg1: i32) -> (i32, i32, i32, i32) {
    %c1_i32 = arith.constant 1 : i32
    %0 = arith.addi %arg1, %c1_i32 : i32
    %c8_i32 = arith.constant 8 : i32
    %1 = arith.muli %0, %c8_i32 : i32
    %c0_i32 = arith.constant 0 : i32
    %c0_i32_0 = arith.constant 0 : i32
    %c0_i32_1 = arith.constant 0 : i32
    return %arg0, %c0_i32, %1, %c0_i32_0 : i32, i32, i32, i32
  }
  func.func @transform_2(%arg0: i32, %arg1: i32) -> (i32, i32) {
    %c0_i32 = arith.constant 0 : i32
    %c0_i32_0 = arith.constant 0 : i32
    %c0_i32_1 = arith.constant 0 : i32
    return %c0_i32, %c0_i32_0 : i32, i32
  }
  func.func @transform_3(%arg0: i32, %arg1: i32) -> (i32, i32) {
    %c0_i32 = arith.constant 0 : i32
    %c0_i32_0 = arith.constant 0 : i32
    %c0_i32_1 = arith.constant 0 : i32
    return %c0_i32, %c0_i32_0 : i32, i32
  }
  func.func @transform_4(%arg0: i32, %arg1: i32) -> (i32, i32) {
    %c0_i32 = arith.constant 0 : i32
    %c0_i32_0 = arith.constant 0 : i32
    %c0_i32_1 = arith.constant 0 : i32
    return %c0_i32, %c0_i32_0 : i32, i32
  }
  func.func @transform_5(%arg0: i32, %arg1: i32) -> (i32, i32) {
    %c0_i32 = arith.constant 0 : i32
    %c0_i32_0 = arith.constant 0 : i32
    %c0_i32_1 = arith.constant 0 : i32
    return %c0_i32, %c0_i32_0 : i32, i32
  }
  func.func @transform_6(%arg0: i32, %arg1: i32) -> (i32, i32, i32) {
    %c0_i32 = arith.constant 0 : i32
    %c0_i32_0 = arith.constant 0 : i32
    return %arg0, %c0_i32, %arg1 : i32, i32, i32
  }
}

</mosaic_0001>

<llo_original>
// kernel: tpu_custom_call.1
$region0: #{tpu_custom_call.1}
  #allocation0 [shape = 'u32[]', space=smem, size = 0x4, offset = 0x4, fixed_abs, tag = 'smem constant byte address 0x4 - core index']
  #allocation1 [shape = 'u32[72,128]{1,0:T(1,128)}', space=vmem, size = 0x9000, scoped, tag = 'internal scratch']
  #allocation2 [shape = 'bf16[2,144,8]{2,1,0:T(8,128)(2,1)}', space=vmem, size = 0x12000, scoped, tag = 'scratch operand']
  #allocation3 [shape = 'bf16[136,16]{1,0:T(8,128)(2,1)}', space=vmem, size = 0x8800, scoped, tag = 'scratch operand']
  %s0 = inlined_call_operand.vmem [shape: bf16[2,2,144,8], index: 0, kind: input, shape index: {}]
  %s1 = inlined_call_operand.vmem [shape: bf16[2,2,144,8], index: 1, kind: input, shape index: {}]
  %s2 = inlined_call_operand.vmem [shape: bf16[24,16], index: 2, kind: input, shape index: {}]
  %s3 = inlined_call_operand.vmem [shape: bf16[48,16], index: 3, kind: input, shape index: {}]
  %s4 = inlined_call_operand.vmem [shape: bf16[8,16], index: 4, kind: input, shape index: {}]
  %s5 = inlined_call_operand.vmem [shape: f32[4,16], index: 5, kind: input, shape index: {}]
  %s6 = inlined_call_operand.hbm [shape: f32[2,16,128], index: 6, kind: output, shape index: {}]
  %s7 = sld [smem:[#allocation0]]
  $region160: #{tpu_custom_call.1} parent=0
    _
  %s9 = ssub.s32 1, %s7
  %s10 = scalar_select 0, %s9, %s7
  $region1: #{tpu_custom_call.1} parent=0
    #allocation4 [shape = 'u8[131072]{0}', space=vmem, size = 0x20000, scoped, tag = 'input window, operand 0']
    #allocation5 [shape = 'u8[16384]{0}', space=vmem, size = 0x4000, scoped, tag = 'input window, operand 1']
    #allocation6 [shape = 'u8[16384]{0}', space=vmem, size = 0x4000, scoped, tag = 'output window, operand 0']
    #allocation7 [shape = 's32[2]{0}', space=sflag, size = 0x8, scoped, tag = 'scoped memory for tpu_custom_call.1']
    %11 = vsyncpa [#allocation7], 0
    %s12 = scalar_lea.sflag [#allocation7], 1
    %13 = vsyncpa %s12, 0
    loop: start=0, step=1, limit=4
    $region2: #{tpu_custom_call.1} parent=1 // loop_pre_header
      _
    $region3: #{tpu_custom_call.1} parent=1 // loop_header
      %s15 = sphi 0, %s19
      %p16 = scmp.ge.s32.totalorder %s15, 4
      %s22 = sphi 0, %s34
      %s23 = sphi 0, %s30
      %s24 = sphi 0, %s22
      %s25 = sphi 0, %s23
      %s26 = sphi 0, %s24
      %s27 = sphi 0, %s25
      %s39 = sphi 0, %s41
      %s42 = sphi 0, %s39
      %s43 = sphi 0, %s42
      %s59 = sphi 0, %s43
      %s71 = sphi 0, %s73
      %s74 = sphi 0, %s71
      %s75 = sphi 0, %s74
      %s91 = sphi 0, %s75
      %s95 = sphi 0, %s95
      %s97 = sphi 0, %s95
      %s98 = sphi 0, %s97
      %s112 = sphi 0, %s98
      %s116 = sphi 0, %s116
      %s118 = sphi 0, %s116
      %s119 = sphi 0, %s118
      %s133 = sphi 0, %s119
      %s137 = sphi 0, %s137
      %s139 = sphi 0, %s137
      %s140 = sphi 0, %s139
      %s154 = sphi 0, %s140
      %s158 = sphi 0, %s158
      %s160 = sphi 0, %s158
      %s161 = sphi 0, %s160
      %s175 = sphi 0, %s161
      %s183 = sphi 0, %s185
      %s186 = sphi 0, %s183
      %s187 = sphi 0, %s186
      %s203 = sphi 0, %s187
    $region4: #{tpu_custom_call.1} parent=1 // loop_header_branch
      %18 = sbr.rel (%p16) target = $region8
    $region5: #{tpu_custom_call.1} parent=1 // loop_body
      %s20 = ssub.s32 %s15, 1
      %s21 = ssub.s32 %s15, 2
      %s28 = sadd.s32 1, %s23
      %p29 = scmp.ge.s32.totalorder %s28, 1
      %s30 = scalar_select %p29, 0, %s28
      %s31 = sadd.s32 1, %s22
      %s32 = scalar_select %p29, %s31, %s22
      %p33 = scmp.ge.s32.totalorder %s32, 2
      %s34 = scalar_select %p33, 0, %s32
      %s35 = ssub.s32 %s22, %s34
      %s36 = ssub.s32 %s23, %s30
      %s37 = sor.u32 %s35, %s36
      %p38 = scmp.eq.s32.totalorder %s37, 0
      %s40 = sadd.s32 %s39, 1
      %s41 = scalar_select %p38, %s39, %s40
      %p44 = pneg %p38
      %p45 = scmp.eq.s32.totalorder %s15, 1
      %p46 = por %p44, %p45
      %p47 = scmp.ne.s32.totalorder %s39, %s42
      %p48 = scmp.eq.s32.totalorder %s15, 0
      %p49 = por %p47, %p48
      %p50 = scmp.ne.s32.totalorder %s39, %s42
      %p51 = scmp.eq.s32.totalorder %s20, 1
      %p52 = por %p50, %p51
      %p53 = scmp.ne.s32.totalorder %s42, %s43
      %p54 = scmp.eq.s32.totalorder %s20, 0
      %p55 = por %p53, %p54
      %p56 = scmp.ne.s32.totalorder %s42, %s43
      %p57 = scmp.eq.s32.totalorder %s21, 1
      %p58 = por %p56, %p57
      %p60 = scmp.ne.s32.totalorder %s43, %s59
      %p61 = scmp.eq.s32.totalorder %s21, 0
      %p62 = por %p60, %p61
      %s63 = sadd.s32 %s23, 1
      %s64 = smul.u32 %s63, 8
      %s65 = sadd.s32 %s30, 1
      %s66 = smul.u32 %s65, 8
      %s67 = ssub.s32 %s22, %s34
      %s68 = ssub.s32 %s64, %s66
      %s69 = sor.u32 %s67, %s68
      %p70 = scmp.eq.s32.totalorder %s69, 0
      %s72 = sadd.s32 %s71, 1
      %s73 = scalar_select %p70, %s71, %s72
      %p76 = pneg %p70
      %p77 = scmp.eq.s32.totalorder %s15, 1
      %p78 = por %p76, %p77
      %p79 = scmp.ne.s32.totalorder %s71, %s74
      %p80 = scmp.eq.s32.totalorder %s15, 0
      %p81 = por %p79, %p80
      %p82 = scmp.ne.s32.totalorder %s71, %s74
      %p83 = scmp.eq.s32.totalorder %s20, 1
      %p84 = por %p82, %p83
      %p85 = scmp.ne.s32.totalorder %s74, %s75
      %p86 = scmp.eq.s32.totalorder %s20, 0
      %p87 = por %p85, %p86
      %p88 = scmp.ne.s32.totalorder %s74, %s75
      %p89 = scmp.eq.s32.totalorder %s21, 1
      %p90 = por %p88, %p89
      %p92 = scmp.ne.s32.totalorder %s75, %s91
      %p93 = scmp.eq.s32.totalorder %s21, 0
      %p94 = por %p92, %p93
      %s96 = sadd.s32 %s95, 1
      %p99 = scmp.eq.s32.totalorder %s15, 1
      %p100 = scmp.ne.s32.totalorder %s95, %s97
      %p101 = scmp.eq.s32.totalorder %s15, 0
      %p102 = por %p100, %p101
      %p103 = scmp.ne.s32.totalorder %s95, %s97
      %p104 = scmp.eq.s32.totalorder %s20, 1
      %p105 = por %p103, %p104
      %p106 = scmp.ne.s32.totalorder %s97, %s98
      %p107 = scmp.eq.s32.totalorder %s20, 0
      %p108 = por %p106, %p107
      %p109 = scmp.ne.s32.totalorder %s97, %s98
      %p110 = scmp.eq.s32.totalorder %s21, 1
      %p111 = por %p109, %p110
      %p113 = scmp.ne.s32.totalorder %s98, %s112
      %p114 = scmp.eq.s32.totalorder %s21, 0
      %p115 = por %p113, %p114
      %s117 = sadd.s32 %s116, 1
      %p120 = scmp.eq.s32.totalorder %s15, 1
      %p121 = scmp.ne.s32.totalorder %s116, %s118
      %p122 = scmp.eq.s32.totalorder %s15, 0
      %p123 = por %p121, %p122
      %p124 = scmp.ne.s32.totalorder %s116, %s118
      %p125 = scmp.eq.s32.totalorder %s20, 1
      %p126 = por %p124, %p125
      %p127 = scmp.ne.s32.totalorder %s118, %s119
      %p128 = scmp.eq.s32.totalorder %s20, 0
      %p129 = por %p127, %p128
      %p130 = scmp.ne.s32.totalorder %s118, %s119
      %p131 = scmp.eq.s32.totalorder %s21, 1
      %p132 = por %p130, %p131
      %p134 = scmp.ne.s32.totalorder %s119, %s133
      %p135 = scmp.eq.s32.totalorder %s21, 0
      %p136 = por %p134, %p135
      %s138 = sadd.s32 %s137, 1
      %p141 = scmp.eq.s32.totalorder %s15, 1
      %p142 = scmp.ne.s32.totalorder %s137, %s139
      %p143 = scmp.eq.s32.totalorder %s15, 0
      %p144 = por %p142, %p143
      %p145 = scmp.ne.s32.totalorder %s137, %s139
      %p146 = scmp.eq.s32.totalorder %s20, 1
      %p147 = por %p145, %p146
      %p148 = scmp.ne.s32.totalorder %s139, %s140
      %p149 = scmp.eq.s32.totalorder %s20, 0
      %p150 = por %p148, %p149
      %p151 = scmp.ne.s32.totalorder %s139, %s140
      %p152 = scmp.eq.s32.totalorder %s21, 1
      %p153 = por %p151, %p152
      %p155 = scmp.ne.s32.totalorder %s140, %s154
      %p156 = scmp.eq.s32.totalorder %s21, 0
      %p157 = por %p155, %p156
      %s159 = sadd.s32 %s158, 1
      %p162 = scmp.eq.s32.totalorder %s15, 1
      %p163 = scmp.ne.s32.totalorder %s158, %s160
      %p164 = scmp.eq.s32.totalorder %s15, 0
      %p165 = por %p163, %p164
      %p166 = scmp.ne.s32.totalorder %s158, %s160
      %p167 = scmp.eq.s32.totalorder %s20, 1
      %p168 = por %p166, %p167
      %p169 = scmp.ne.s32.totalorder %s160, %s161
      %p170 = scmp.eq.s32.totalorder %s20, 0
      %p171 = por %p169, %p170
      %p172 = scmp.ne.s32.totalorder %s160, %s161
      %p173 = scmp.eq.s32.totalorder %s21, 1
      %p174 = por %p172, %p173
      %p176 = scmp.ne.s32.totalorder %s161, %s175
      %p177 = scmp.eq.s32.totalorder %s21, 0
      %p178 = por %p176, %p177
      %s179 = ssub.s32 %s22, %s34
      %s180 = ssub.s32 %s23, %s30
      %s181 = sor.u32 %s179, %s180
      %p182 = scmp.eq.s32.totalorder %s181, 0
      %s184 = sadd.s32 %s183, 1
      %s185 = scalar_select %p182, %s183, %s184
      %p188 = pneg %p182
      %p189 = scmp.eq.s32.totalorder %s15, 1
      %p190 = por %p188, %p189
      %p191 = scmp.ne.s32.totalorder %s183, %s186
      %p192 = scmp.eq.s32.totalorder %s15, 0
      %p193 = por %p191, %p192
      %p194 = scmp.ne.s32.totalorder %s183, %s186
      %p195 = scmp.eq.s32.totalorder %s20, 1
      %p196 = por %p194, %p195
      %p197 = scmp.ne.s32.totalorder %s186, %s187
      %p198 = scmp.eq.s32.totalorder %s20, 0
      %p199 = por %p197, %p198
      %p200 = scmp.ne.s32.totalorder %s186, %s187
      %p201 = scmp.eq.s32.totalorder %s21, 1
      %p202 = por %p200, %p201
      %p204 = scmp.ne.s32.totalorder %s187, %s203
      %p205 = scmp.eq.s32.totalorder %s21, 0
      %p206 = por %p204, %p205
      %p207 = scmp.le.s32.totalorder 1, %s15
      %p208 = scmp.lt.s32.totalorder %s15, 3
      %p209 = pnand %p207, %p208
      %p210 = pneg %p209
      // Predicated region
      $region9: #{tpu_custom_call.1} parent=5 // pred_check
        _
      $region10: #{tpu_custom_call.1} parent=5 // pred_check_branch
        %212 = sbr.rel (%p209) target = $region12
      $region11: #{tpu_custom_call.1} parent=5 // pred_region
        %s213 = ssub.s32 %s15, 1
        // Predicated region
        $region13: #{tpu_custom_call.1} parent=11 // pred_check
          %p214 = pneg %p108
        $region14: #{tpu_custom_call.1} parent=11 // pred_check_branch
          %216 = sbr.rel (%p214) target = $region16
        $region15: #{tpu_custom_call.1} parent=11 // pred_region
          _
        $region16: #{tpu_custom_call.1} parent=11 // pred_fallthru
          _
        // Predicated region
        $region17: #{tpu_custom_call.1} parent=11 // pred_check
          %p217 = pneg %p129
        $region18: #{tpu_custom_call.1} parent=11 // pred_check_branch
          %219 = sbr.rel (%p217) target = $region20
        $region19: #{tpu_custom_call.1} parent=11 // pred_region
          _
        $region20: #{tpu_custom_call.1} parent=11 // pred_fallthru
          _
        // Predicated region
        $region21: #{tpu_custom_call.1} parent=11 // pred_check
          %p220 = pneg %p150
        $region22: #{tpu_custom_call.1} parent=11 // pred_check_branch
          %222 = sbr.rel (%p220) target = $region24
        $region23: #{tpu_custom_call.1} parent=11 // pred_region
          _
        $region24: #{tpu_custom_call.1} parent=11 // pred_fallthru
          _
        // Predicated region
        $region25: #{tpu_custom_call.1} parent=11 // pred_check
          %p223 = pneg %p171
        $region26: #{tpu_custom_call.1} parent=11 // pred_check_branch
          %225 = sbr.rel (%p223) target = $region28
        $region27: #{tpu_custom_call.1} parent=11 // pred_region
          _
        $region28: #{tpu_custom_call.1} parent=11 // pred_fallthru
          _
      $region12: #{tpu_custom_call.1} parent=5 // pred_fallthru
        _
      %p226 = scmp.lt.s32.totalorder %s15, 2
      // Predicated region
      $region29: #{tpu_custom_call.1} parent=5 // pred_check
        %p227 = pneg %p226
      $region30: #{tpu_custom_call.1} parent=5 // pred_check_branch
        %229 = sbr.rel (%p227) target = $region32
      $region31: #{tpu_custom_call.1} parent=5 // pred_region
        // Predicated region
        $region33: #{tpu_custom_call.1} parent=31 // pred_check
          %p230 = pneg %p49
        $region34: #{tpu_custom_call.1} parent=31 // pred_check_branch
          %232 = sbr.rel (%p230) target = $region36
        $region35: #{tpu_custom_call.1} parent=31 // pred_region
          %s233 = sand.u32 %s39, 1
          %s234 = sand.u32 %s39, 1
          %s235 = smul.addr %s234, 128
          %s236 = scalar_lea.vmem [#allocation4], %s235
          %s237 = smul.u32 16, %s23
          %s238 = ssub.s32 18, %s237
          %p239 = scmp.lt.s32.totalorder %s238, 16
          %s240 = scalar_select %p239, %s238, 16
          %s241 = smul.u32 8, %s240
          %p242 = scmp.ne.s32.totalorder 0, %s241
          %s243 = smul.addr %s22, 36
          %s244 = sadd.s32 %s237, %s243
          %s245 = smul.addr %s244, 4
          %s246 = scalar_lea.vmem %s0, %s245
          // Predicated region
          $region37: #{tpu_custom_call.1} parent=35 // pred_check
            %p247 = pneg %p242
          $region38: #{tpu_custom_call.1} parent=35 // pred_check_branch
            %249 = sbr.rel (%p247) target = $region40
          $region39: #{tpu_custom_call.1} parent=35 // pred_region
            // Predicated region
            $region41: #{tpu_custom_call.1} parent=39 // pred_check
              _
            $region42: #{tpu_custom_call.1} parent=39 // pred_check_branch
              %251 = sbr.rel target = $region44
            $region43: #{tpu_custom_call.1} parent=39 // pred_region
              // Predicated region
              $region63: #{tpu_custom_call.1} parent=43 // pred_check
                _
              $region64: #{tpu_custom_call.1} parent=43 // pred_check_branch
                %365 = sbr.rel (0) target = $region66
              $region65: #{tpu_custom_call.1} parent=43 // pred_region
                %s366 = sshrl.u32 %s240, 4
                // While loop
                $region67: #{tpu_custom_call.1} parent=65 // loop_pre_header
                  _
                $region68: #{tpu_custom_call.1} parent=65 // loop_header
                  %s368 = sphi 0, %s370
                  %p369 = scmp.ge.s32.totalorder %s368, %s366
                  %s373 = sphi 0, %s378
                  %s374 = sphi %s246, %s381
                  %s375 = sphi %s236, %s382
                $region69: #{tpu_custom_call.1} parent=65 // loop_header_branch
                  %372 = sbr.rel (%p369) target = $region73
                $region70: #{tpu_custom_call.1} parent=65 // loop_body
                  %s376 = sadd.s32 1, %s373
                  %p377 = scmp.ge.s32.totalorder %s376, %s366
                  %s378 = scalar_select %p377, 0, %s376
                  %s379 = smul.u32 %s378, 64
                  %s380 = smul.u32 %s378, 64
                  %s381 = scalar_lea.vmem %s246, %s379
                  %s382 = scalar_lea.vmem %s236, %s380 [#allocation4]
                $region71: #{tpu_custom_call.1} parent=65 // loop_footer
                  %s370 = sadd.s32 %s368, 1
                $region72: #{tpu_custom_call.1} parent=65 // loop_footer_branch
                  %367 = sbr.rel target = $region68
                $region73: #{tpu_custom_call.1} parent=65 // loop_exit
                  _
                %s383 = sshrl.u32 %s240, 4
                %s384 = sand.u32 %s240, 15
                %s385 = smul.u32 %s383, 16
                %s386 = smul.u32 4, %s385
                %s387 = scalar_lea.vmem %s246, %s386
                %s388 = smul.u32 4, %s385
                %s389 = scalar_lea.vmem %s236, %s388 [#allocation4]
                // While loop
                $region74: #{tpu_custom_call.1} parent=65 // loop_pre_header
                  _
                $region75: #{tpu_custom_call.1} parent=65 // loop_header
                  %s391 = sphi 0, %s393
                  %p392 = scmp.ge.s32.totalorder %s391, %s384
                  %s396 = sphi 0, %s401
                  %s397 = sphi %s387, %s404
                  %s398 = sphi %s389, %s405
                $region76: #{tpu_custom_call.1} parent=65 // loop_header_branch
                  %395 = sbr.rel (%p392) target = $region80
                $region77: #{tpu_custom_call.1} parent=65 // loop_body
                  %s399 = sadd.s32 1, %s396
                  %p400 = scmp.ge.s32.totalorder %s399, %s384
                  %s401 = scalar_select %p400, 0, %s399
                  %s402 = smul.u32 %s401, 4
                  %s403 = smul.u32 %s401, 4
                  %s404 = scalar_lea.vmem %s387, %s402
                  %s405 = scalar_lea.vmem %s389, %s403 [#allocation4]
                $region78: #{tpu_custom_call.1} parent=65 // loop_footer
                  %s393 = sadd.s32 %s391, 1
                $region79: #{tpu_custom_call.1} parent=65 // loop_footer_branch
                  %390 = sbr.rel target = $region75
                $region80: #{tpu_custom_call.1} parent=65 // loop_exit
                  _
                %s407 = ssub.s32 16, 1
                %s408 = sshrl.u32 %s240, 4
                // While loop
                $region81: #{tpu_custom_call.1} parent=65 // loop_pre_header
                  _
                $region82: #{tpu_custom_call.1} parent=65 // loop_header
                  %s410 = sphi 0, %s412
                  %p411 = scmp.ge.s32.totalorder %s410, %s408
                  %s415 = sphi 0, %s484
                  %s416 = sphi %s246, %s487
                  %s417 = sphi %s236, %s488
                $region83: #{tpu_custom_call.1} parent=65 // loop_header_branch
                  %414 = sbr.rel (%p411) target = $region87
                $region84: #{tpu_custom_call.1} parent=65 // loop_body
                  %v418 = vld [vmem:[%s416] sm:%s407]
                  %419 = vst [vmem:[%s417] sm:%s407] %v418
                  %v420 = vld [vmem:[%s416 + $0x4] sm:%s407]
                  %421 = vst [vmem:[%s417 + $0x4] sm:%s407] %v420
                  %v422 = vld [vmem:[%s416 + $0x8] sm:%s407]
                  %423 = vst [vmem:[%s417 + $0x8] sm:%s407] %v422
                  %v424 = vld [vmem:[%s416 + $0xc] sm:%s407]
                  %425 = vst [vmem:[%s417 + $0xc] sm:%s407] %v424
                  %v426 = vld [vmem:[%s416 + $0x10] sm:%s407]
                  %427 = vst [vmem:[%s417 + $0x10] sm:%s407] %v426
                  %v428 = vld [vmem:[%s416 + $0x14] sm:%s407]
                  %429 = vst [vmem:[%s417 + $0x14] sm:%s407] %v428
                  %v430 = vld [vmem:[%s416 + $0x18] sm:%s407]
                  %431 = vst [vmem:[%s417 + $0x18] sm:%s407] %v430
                  %v432 = vld [vmem:[%s416 + $0x1c] sm:%s407]
                  %433 = vst [vmem:[%s417 + $0x1c] sm:%s407] %v432
                  %v434 = vld [vmem:[%s416 + $0x20] sm:%s407]
                  %435 = vst [vmem:[%s417 + $0x20] sm:%s407] %v434
                  %v436 = vld [vmem:[%s416 + $0x24] sm:%s407]
                  %437 = vst [vmem:[%s417 + $0x24] sm:%s407] %v436
                  %v438 = vld [vmem:[%s416 + $0x28] sm:%s407]
                  %439 = vst [vmem:[%s417 + $0x28] sm:%s407] %v438
                  %v440 = vld [vmem:[%s416 + $0x2c] sm:%s407]
                  %441 = vst [vmem:[%s417 + $0x2c] sm:%s407] %v440
                  %v442 = vld [vmem:[%s416 + $0x30] sm:%s407]
                  %443 = vst [vmem:[%s417 + $0x30] sm:%s407] %v442
                  %v444 = vld [vmem:[%s416 + $0x34] sm:%s407]
                  %445 = vst [vmem:[%s417 + $0x34] sm:%s407] %v444
                  %v446 = vld [vmem:[%s416 + $0x38] sm:%s407]
                  %447 = vst [vmem:[%s417 + $0x38] sm:%s407] %v446
                  %v448 = vld [vmem:[%s416 + $0x3c] sm:%s407]
                  %449 = vst [vmem:[%s417 + $0x3c] sm:%s407] %v448
                  %v450 = vld [vmem:[%s416 + $0x48] sm:%s407]
                  %451 = vst [vmem:[%s417 + $0x40] sm:%s407] %v450
                  %v452 = vld [vmem:[%s416 + $0x4c] sm:%s407]
                  %453 = vst [vmem:[%s417 + $0x44] sm:%s407] %v452
                  %v454 = vld [vmem:[%s416 + $0x50] sm:%s407]
                  %455 = vst [vmem:[%s417 + $0x48] sm:%s407] %v454
                  %v456 = vld [vmem:[%s416 + $0x54] sm:%s407]
                  %457 = vst [vmem:[%s417 + $0x4c] sm:%s407] %v456
                  %v458 = vld [vmem:[%s416 + $0x58] sm:%s407]
                  %459 = vst [vmem:[%s417 + $0x50] sm:%s407] %v458
                  %v460 = vld [vmem:[%s416 + $0x5c] sm:%s407]
                  %461 = vst [vmem:[%s417 + $0x54] sm:%s407] %v460
                  %v462 = vld [vmem:[%s416 + $0x60] sm:%s407]
                  %463 = vst [vmem:[%s417 + $0x58] sm:%s407] %v462
                  %v464 = vld [vmem:[%s416 + $0x64] sm:%s407]
                  %465 = vst [vmem:[%s417 + $0x5c] sm:%s407] %v464
                  %v466 = vld [vmem:[%s416 + $0x68] sm:%s407]
                  %467 = vst [vmem:[%s417 + $0x60] sm:%s407] %v466
                  %v468 = vld [vmem:[%s416 + $0x6c] sm:%s407]
                  %469 = vst [vmem:[%s417 + $0x64] sm:%s407] %v468
                  %v470 = vld [vmem:[%s416 + $0x70] sm:%s407]
                  %471 = vst [vmem:[%s417 + $0x68] sm:%s407] %v470
                  %v472 = vld [vmem:[%s416 + $0x74] sm:%s407]
                  %473 = vst [vmem:[%s417 + $0x6c] sm:%s407] %v472
                  %v474 = vld [vmem:[%s416 + $0x78] sm:%s407]
                  %475 = vst [vmem:[%s417 + $0x70] sm:%s407] %v474
                  %v476 = vld [vmem:[%s416 + $0x7c] sm:%s407]
                  %477 = vst [vmem:[%s417 + $0x74] sm:%s407] %v476
                  %v478 = vld [vmem:[%s416 + $0x80] sm:%s407]
                  %479 = vst [vmem:[%s417 + $0x78] sm:%s407] %v478
                  %v480 = vld [vmem:[%s416 + $0x84] sm:%s407]
                  %481 = vst [vmem:[%s417 + $0x7c] sm:%s407] %v480
                  %s482 = sadd.s32 1, %s415
                  %p483 = scmp.ge.s32.totalorder %s482, %s408
                  %s484 = scalar_select %p483, 0, %s482
                  %s485 = smul.u32 %s484, 64
                  %s486 = smul.u32 %s484, 64
                  %s487 = scalar_lea.vmem %s246, %s485
                  %s488 = scalar_lea.vmem %s236, %s486 [#allocation4]
                $region85: #{tpu_custom_call.1} parent=65 // loop_footer
                  %s412 = sadd.s32 %s410, 1
                $region86: #{tpu_custom_call.1} parent=65 // loop_footer_branch
                  %409 = sbr.rel target = $region82
                $region87: #{tpu_custom_call.1} parent=65 // loop_exit
                  _
                %s489 = sshrl.u32 %s240, 4
                %s490 = sand.u32 %s240, 15
                %s491 = smul.u32 %s489, 16
                %s492 = smul.u32 4, %s491
                %s493 = scalar_lea.vmem %s246, %s492
                %s494 = smul.u32 4, %s491
                %s495 = scalar_lea.vmem %s236, %s494 [#allocation4]
                // While loop
                $region88: #{tpu_custom_call.1} parent=65 // loop_pre_header
                  _
                $region89: #{tpu_custom_call.1} parent=65 // loop_header
                  %s497 = sphi 0, %s499
                  %p498 = scmp.ge.s32.totalorder %s497, %s490
                  %s502 = sphi 0, %s511
                  %s503 = sphi %s493, %s514
                  %s504 = sphi %s495, %s515
                $region90: #{tpu_custom_call.1} parent=65 // loop_header_branch
                  %501 = sbr.rel (%p498) target = $region94
                $region91: #{tpu_custom_call.1} parent=65 // loop_body
                  %v505 = vld [vmem:[%s503] sm:%s407]
                  %506 = vst [vmem:[%s504] sm:%s407] %v505
                  %v507 = vld [vmem:[%s503 + $0x48] sm:%s407]
                  %508 = vst [vmem:[%s504 + $0x40] sm:%s407] %v507
                  %s509 = sadd.s32 1, %s502
                  %p510 = scmp.ge.s32.totalorder %s509, %s490
                  %s511 = scalar_select %p510, 0, %s509
                  %s512 = smul.u32 %s511, 4
                  %s513 = smul.u32 %s511, 4
                  %s514 = scalar_lea.vmem %s493, %s512
                  %s515 = scalar_lea.vmem %s495, %s513 [#allocation4]
                $region92: #{tpu_custom_call.1} parent=65 // loop_footer
                  %s499 = sadd.s32 %s497, 1
                $region93: #{tpu_custom_call.1} parent=65 // loop_footer_branch
                  %496 = sbr.rel target = $region89
                $region94: #{tpu_custom_call.1} parent=65 // loop_exit
                  _
              $region66: #{tpu_custom_call.1} parent=43 // pred_fallthru
                _
            $region44: #{tpu_custom_call.1} parent=39 // pred_fallthru
              _
            // Predicated region
            $region45: #{tpu_custom_call.1} parent=39 // pred_check
              _
            $region46: #{tpu_custom_call.1} parent=39 // pred_check_branch
              %253 = sbr.rel (0) target = $region48
            $region47: #{tpu_custom_call.1} parent=39 // pred_region
              %s255 = ssub.s32 16, 1
              %s256 = sshrl.u32 %s240, 4
              // While loop
              $region49: #{tpu_custom_call.1} parent=47 // loop_pre_header
                _
              $region50: #{tpu_custom_call.1} parent=47 // loop_header
                %s258 = sphi 0, %s260
                %p259 = scmp.ge.s32.totalorder %s258, %s256
                %s263 = sphi 0, %s332
                %s264 = sphi %s246, %s335
                %s265 = sphi %s236, %s336
              $region51: #{tpu_custom_call.1} parent=47 // loop_header_branch
                %262 = sbr.rel (%p259) target = $region55
              $region52: #{tpu_custom_call.1} parent=47 // loop_body
                %v266 = vld [vmem:[%s264] sm:%s255]
                %267 = vst [vmem:[%s265] sm:%s255] %v266
                %v268 = vld [vmem:[%s264 + $0x4] sm:%s255]
                %269 = vst [vmem:[%s265 + $0x4] sm:%s255] %v268
                %v270 = vld [vmem:[%s264 + $0x8] sm:%s255]
                %271 = vst [vmem:[%s265 + $0x8] sm:%s255] %v270
                %v272 = vld [vmem:[%s264 + $0xc] sm:%s255]
                %273 = vst [vmem:[%s265 + $0xc] sm:%s255] %v272
                %v274 = vld [vmem:[%s264 + $0x10] sm:%s255]
                %275 = vst [vmem:[%s265 + $0x10] sm:%s255] %v274
                %v276 = vld [vmem:[%s264 + $0x14] sm:%s255]
                %277 = vst [vmem:[%s265 + $0x14] sm:%s255] %v276
                %v278 = vld [vmem:[%s264 + $0x18] sm:%s255]
                %279 = vst [vmem:[%s265 + $0x18] sm:%s255] %v278
                %v280 = vld [vmem:[%s264 + $0x1c] sm:%s255]
                %281 = vst [vmem:[%s265 + $0x1c] sm:%s255] %v280
                %v282 = vld [vmem:[%s264 + $0x20] sm:%s255]
                %283 = vst [vmem:[%s265 + $0x20] sm:%s255] %v282
                %v284 = vld [vmem:[%s264 + $0x24] sm:%s255]
                %285 = vst [vmem:[%s265 + $0x24] sm:%s255] %v284
                %v286 = vld [vmem:[%s264 + $0x28] sm:%s255]
                %287 = vst [vmem:[%s265 + $0x28] sm:%s255] %v286
                %v288 = vld [vmem:[%s264 + $0x2c] sm:%s255]
                %289 = vst [vmem:[%s265 + $0x2c] sm:%s255] %v288
                %v290 = vld [vmem:[%s264 + $0x30] sm:%s255]
                %291 = vst [vmem:[%s265 + $0x30] sm:%s255] %v290
                %v292 = vld [vmem:[%s264 + $0x34] sm:%s255]
                %293 = vst [vmem:[%s265 + $0x34] sm:%s255] %v292
                %v294 = vld [vmem:[%s264 + $0x38] sm:%s255]
                %295 = vst [vmem:[%s265 + $0x38] sm:%s255] %v294
                %v296 = vld [vmem:[%s264 + $0x3c] sm:%s255]
                %297 = vst [vmem:[%s265 + $0x3c] sm:%s255] %v296
                %v298 = vld [vmem:[%s264 + $0x48] sm:%s255]
                %299 = vst [vmem:[%s265 + $0x40] sm:%s255] %v298
                %v300 = vld [vmem:[%s264 + $0x4c] sm:%s255]
                %301 = vst [vmem:[%s265 + $0x44] sm:%s255] %v300
                %v302 = vld [vmem:[%s264 + $0x50] sm:%s255]
                %303 = vst [vmem:[%s265 + $0x48] sm:%s255] %v302
                %v304 = vld [vmem:[%s264 + $0x54] sm:%s255]
                %305 = vst [vmem:[%s265 + $0x4c] sm:%s255] %v304
                %v306 = vld [vmem:[%s264 + $0x58] sm:%s255]
                %307 = vst [vmem:[%s265 + $0x50] sm:%s255] %v306
                %v308 = vld [vmem:[%s264 + $0x5c] sm:%s255]
                %309 = vst [vmem:[%s265 + $0x54] sm:%s255] %v308
                %v310 = vld [vmem:[%s264 + $0x60] sm:%s255]
                %311 = vst [vmem:[%s265 + $0x58] sm:%s255] %v310
                %v312 = vld [vmem:[%s264 + $0x64] sm:%s255]
                %313 = vst [vmem:[%s265 + $0x5c] sm:%s255] %v312
                %v314 = vld [vmem:[%s264 + $0x68] sm:%s255]
                %315 = vst [vmem:[%s265 + $0x60] sm:%s255] %v314
                %v316 = vld [vmem:[%s264 + $0x6c] sm:%s255]
                %317 = vst [vmem:[%s265 + $0x64] sm:%s255] %v316
                %v318 = vld [vmem:[%s264 + $0x70] sm:%s255]
                %319 = vst [vmem:[%s265 + $0x68] sm:%s255] %v318
                %v320 = vld [vmem:[%s264 + $0x74] sm:%s255]
                %321 = vst [vmem:[%s265 + $0x6c] sm:%s255] %v320
                %v322 = vld [vmem:[%s264 + $0x78] sm:%s255]
                %323 = vst [vmem:[%s265 + $0x70] sm:%s255] %v322
                %v324 = vld [vmem:[%s264 + $0x7c] sm:%s255]
                %325 = vst [vmem:[%s265 + $0x74] sm:%s255] %v324
                %v326 = vld [vmem:[%s264 + $0x80] sm:%s255]
                %327 = vst [vmem:[%s265 + $0x78] sm:%s255] %v326
                %v328 = vld [vmem:[%s264 + $0x84] sm:%s255]
                %329 = vst [vmem:[%s265 + $0x7c] sm:%s255] %v328
                %s330 = sadd.s32 1, %s263
                %p331 = scmp.ge.s32.totalorder %s330, %s256
                %s332 = scalar_select %p331, 0, %s330
                %s333 = smul.u32 %s332, 64
                %s334 = smul.u32 %s332, 64
                %s335 = scalar_lea.vmem %s246, %s333
                %s336 = scalar_lea.vmem %s236, %s334 [#allocation4]
              $region53: #{tpu_custom_call.1} parent=47 // loop_footer
                %s260 = sadd.s32 %s258, 1
              $region54: #{tpu_custom_call.1} parent=47 // loop_footer_branch
                %257 = sbr.rel target = $region50
              $region55: #{tpu_custom_call.1} parent=47 // loop_exit
                _
              %s337 = sshrl.u32 %s240, 4
              %s338 = sand.u32 %s240, 15
              %s339 = smul.u32 %s337, 16
              %s340 = smul.u32 4, %s339
              %s341 = scalar_lea.vmem %s246, %s340
              %s342 = smul.u32 4, %s339
              %s343 = scalar_lea.vmem %s236, %s342 [#allocation4]
              // While loop
              $region56: #{tpu_custom_call.1} parent=47 // loop_pre_header
                _
              $region57: #{tpu_custom_call.1} parent=47 // loop_header
                %s345 = sphi 0, %s347
                %p346 = scmp.ge.s32.totalorder %s345, %s338
                %s350 = sphi 0, %s359
                %s351 = sphi %s341, %s362
                %s352 = sphi %s343, %s363
              $region58: #{tpu_custom_call.1} parent=47 // loop_header_branch
                %349 = sbr.rel (%p346) target = $region62
              $region59: #{tpu_custom_call.1} parent=47 // loop_body
                %v353 = vld [vmem:[%s351] sm:%s255]
                %354 = vst [vmem:[%s352] sm:%s255] %v353
                %v355 = vld [vmem:[%s351 + $0x48] sm:%s255]
                %356 = vst [vmem:[%s352 + $0x40] sm:%s255] %v355
                %s357 = sadd.s32 1, %s350
                %p358 = scmp.ge.s32.totalorder %s357, %s338
                %s359 = scalar_select %p358, 0, %s357
                %s360 = smul.u32 %s359, 4
                %s361 = smul.u32 %s359, 4
                %s362 = scalar_lea.vmem %s341, %s360
                %s363 = scalar_lea.vmem %s343, %s361 [#allocation4]
              $region60: #{tpu_custom_call.1} parent=47 // loop_footer
                %s347 = sadd.s32 %s345, 1
              $region61: #{tpu_custom_call.1} parent=47 // loop_footer_branch
                %344 = sbr.rel target = $region57
              $region62: #{tpu_custom_call.1} parent=47 // loop_exit
                _
            $region48: #{tpu_custom_call.1} parent=39 // pred_fallthru
              _
          $region40: #{tpu_custom_call.1} parent=35 // pred_fallthru
            _
          %516 = vnop
        $region36: #{tpu_custom_call.1} parent=31 // pred_fallthru
          _
        // Predicated region
        $region95: #{tpu_custom_call.1} parent=31 // pred_check
          %p517 = pneg %p81
        $region96: #{tpu_custom_call.1} parent=31 // pred_check_branch
          %519 = sbr.rel (%p517) target = $region98
        $region97: #{tpu_custom_call.1} parent=31 // pred_region
          %s520 = sand.u32 %s71, 1
          %s521 = sand.u32 %s71, 1
          %s522 = smul.addr %s521, 16
          %s523 = scalar_lea.vmem [#allocation5], %s522
          %s524 = sadd.s32 %s23, 1
          %s525 = smul.u32 %s524, 8
          %s526 = smul.u32 2, %s525
          %s527 = smul.addr %s22, 36
          %s528 = sadd.s32 %s526, %s527
          %s529 = smul.addr %s528, 4
          %s530 = scalar_lea.vmem %s1, %s529
          // Predicated region
          $region99: #{tpu_custom_call.1} parent=97 // pred_check
            _
          $region100: #{tpu_custom_call.1} parent=97 // pred_check_branch
            %532 = sbr.rel (0) target = $region102
          $region101: #{tpu_custom_call.1} parent=97 // pred_region
            // Predicated region
            $region103: #{tpu_custom_call.1} parent=101 // pred_check
              _
            $region104: #{tpu_custom_call.1} parent=101 // pred_check_branch
              %534 = sbr.rel target = $region106
            $region105: #{tpu_custom_call.1} parent=101 // pred_region
              // Predicated region
              $region118: #{tpu_custom_call.1} parent=105 // pred_check
                _
              $region119: #{tpu_custom_call.1} parent=105 // pred_check_branch
                %556 = sbr.rel (0) target = $region121
              $region120: #{tpu_custom_call.1} parent=105 // pred_region
                loop: start=0, step=1, limit=1
                $region122: #{tpu_custom_call.1} parent=120 // loop_pre_header
                  _
                $region123: #{tpu_custom_call.1} parent=120 // loop_header
                  %s558 = sphi 0, %s562
                  %p559 = scmp.ge.s32.totalorder %s558, 1
                  %s563 = sphi %s530, %s530
                  %s564 = sphi %s523, %s523
                $region124: #{tpu_custom_call.1} parent=120 // loop_header_branch
                  %561 = sbr.rel (%p559) target = $region128
                $region125: #{tpu_custom_call.1} parent=120 // loop_body
                  _
                $region126: #{tpu_custom_call.1} parent=120 // loop_footer
                  %s562 = sadd.s32 1, %s558
                $region127: #{tpu_custom_call.1} parent=120 // loop_footer_branch
                  %557 = sbr.rel target = $region123
                $region128: #{tpu_custom_call.1} parent=120 // loop_exit
                  _
                %s566 = ssub.s32 16, 1
                loop: start=0, step=1, limit=1
                $region129: #{tpu_custom_call.1} parent=120 // loop_pre_header
                  _
                $region130: #{tpu_custom_call.1} parent=120 // loop_header
                  %s568 = sphi 0, %s572
                  %p569 = scmp.ge.s32.totalorder %s568, 1
                  %s573 = sphi %s530, %s530
                  %s574 = sphi %s523, %s523
                $region131: #{tpu_custom_call.1} parent=120 // loop_header_branch
                  %571 = sbr.rel (%p569) target = $region135
                $region132: #{tpu_custom_call.1} parent=120 // loop_body
                  %v575 = vld [vmem:[%s573] sm:%s566]
                  %576 = vst [vmem:[%s574] sm:%s566] %v575
                  %v577 = vld [vmem:[%s573 + $0x4] sm:%s566]
                  %578 = vst [vmem:[%s574 + $0x4] sm:%s566] %v577
                  %v579 = vld [vmem:[%s573 + $0x48] sm:%s566]
                  %580 = vst [vmem:[%s574 + $0x8] sm:%s566] %v579
                  %v581 = vld [vmem:[%s573 + $0x4c] sm:%s566]
                  %582 = vst [vmem:[%s574 + $0xc] sm:%s566] %v581
                $region133: #{tpu_custom_call.1} parent=120 // loop_footer
                  %s572 = sadd.s32 1, %s568
                $region134: #{tpu_custom_call.1} parent=120 // loop_footer_branch
                  %567 = sbr.rel target = $region130
                $region135: #{tpu_custom_call.1} parent=120 // loop_exit
                  _
              $region121: #{tpu_custom_call.1} parent=105 // pred_fallthru
                _
            $region106: #{tpu_custom_call.1} parent=101 // pred_fallthru
              _
            // Predicated region
            $region107: #{tpu_custom_call.1} parent=101 // pred_check
              _
            $region108: #{tpu_custom_call.1} parent=101 // pred_check_branch
              %536 = sbr.rel (0) target = $region110
            $region109: #{tpu_custom_call.1} parent=101 // pred_region
              %s538 = ssub.s32 16, 1
              loop: start=0, step=1, limit=1
              $region111: #{tpu_custom_call.1} parent=109 // loop_pre_header
                _
              $region112: #{tpu_custom_call.1} parent=109 // loop_header
                %s540 = sphi 0, %s544
                %p541 = scmp.ge.s32.totalorder %s540, 1
                %s545 = sphi %s530, %s530
                %s546 = sphi %s523, %s523
              $region113: #{tpu_custom_call.1} parent=109 // loop_header_branch
                %543 = sbr.rel (%p541) target = $region117
              $region114: #{tpu_custom_call.1} parent=109 // loop_body
                %v547 = vld [vmem:[%s545] sm:%s538]
                %548 = vst [vmem:[%s546] sm:%s538] %v547
                %v549 = vld [vmem:[%s545 + $0x4] sm:%s538]
                %550 = vst [vmem:[%s546 + $0x4] sm:%s538] %v549
                %v551 = vld [vmem:[%s545 + $0x48] sm:%s538]
                %552 = vst [vmem:[%s546 + $0x8] sm:%s538] %v551
                %v553 = vld [vmem:[%s545 + $0x4c] sm:%s538]
                %554 = vst [vmem:[%s546 + $0xc] sm:%s538] %v553
              $region115: #{tpu_custom_call.1} parent=109 // loop_footer
                %s544 = sadd.s32 1, %s540
              $region116: #{tpu_custom_call.1} parent=109 // loop_footer_branch
                %539 = sbr.rel target = $region112
              $region117: #{tpu_custom_call.1} parent=109 // loop_exit
                _
            $region110: #{tpu_custom_call.1} parent=101 // pred_fallthru
              _
          $region102: #{tpu_custom_call.1} parent=97 // pred_fallthru
            _
          %583 = vnop
        $region98: #{tpu_custom_call.1} parent=31 // pred_fallthru
          _
      $region32: #{tpu_custom_call.1} parent=5 // pred_fallthru
        _
      %p584 = scmp.le.s32.totalorder 1, %s15
      %p585 = scmp.lt.s32.totalorder %s15, 3
      %p586 = pnand %p584, %p585
      %p587 = pneg %p586
      // Predicated region
      $region136: #{tpu_custom_call.1} parent=5 // pred_check
        _
      $region137: #{tpu_custom_call.1} parent=5 // pred_check_branch
        %589 = sbr.rel (%p586) target = $region139
      $region138: #{tpu_custom_call.1} parent=5 // pred_region
        %s590 = ssub.s32 %s15, 1
        %s591 = sand.u32 %s42, 1
        %s592 = sand.u32 %s42, 1
        %s593 = smul.addr %s592, 128
        %s594 = scalar_lea.vmem [#allocation4], %s593
        // Predicated region
        $region140: #{tpu_custom_call.1} parent=138 // pred_check
          %p595 = pneg %p55
        $region141: #{tpu_custom_call.1} parent=138 // pred_check_branch
          %597 = sbr.rel (%p595) target = $region143
        $region142: #{tpu_custom_call.1} parent=138 // pred_region
          _
        $region143: #{tpu_custom_call.1} parent=138 // pred_fallthru
          _
        %s598 = sand.u32 %s74, 1
        %s599 = sand.u32 %s74, 1
        %s600 = smul.addr %s599, 16
        %s601 = scalar_lea.vmem [#allocation5], %s600
        // Predicated region
        $region144: #{tpu_custom_call.1} parent=138 // pred_check
          %p602 = pneg %p87
        $region145: #{tpu_custom_call.1} parent=138 // pred_check_branch
          %604 = sbr.rel (%p602) target = $region147
        $region146: #{tpu_custom_call.1} parent=138 // pred_region
          _
        $region147: #{tpu_custom_call.1} parent=138 // pred_fallthru
          _
        %s605 = sand.u32 %s42, 1
        %s606 = sand.u32 %s42, 1
        %s607 = smul.addr %s606, 128
        %s608 = scalar_lea.vmem [#allocation4], %s607
        %p609 = pneg %p55
        %p610 = pneg %p52
        %s611 = sand.u32 %s74, 1
        %s612 = sand.u32 %s74, 1
        %s613 = smul.addr %s612, 16
        %s614 = scalar_lea.vmem [#allocation5], %s613
        %p615 = pneg %p87
        %p616 = pneg %p84
        %p617 = pneg %p108
        %p618 = pneg %p105
        %p619 = pneg %p129
        %p620 = pneg %p126
        %p621 = pneg %p150
        %p622 = pneg %p147
        %p623 = pneg %p171
        %p624 = pneg %p168
        %p625 = pneg %p199
        %p626 = pneg %p196
        %s627 = sand.u32 %s186, 1
        %s628 = scalar_lea.sflag [#allocation7], %s627
        %s629 = sand.u32 %s186, 1
        %s630 = smul.addr %s629, 16
        %s631 = scalar_lea.vmem [#allocation6], %s630
        %s632 = smul.u32 16, %s25
        %s633 = ssub.s32 18, %s632
        %p634 = scmp.lt.s32.totalorder %s633, 16
        %s635 = scalar_select %p634, %s633, 16
        %s636 = smul.u32 8, %s635
        %s637 = sadd.s32 %s25, 1
        %s638 = smul.u32 %s637, 8
        %s639 = smul.u32 2, %s638
        %v641 = vld [vmem:[%s5] sm:$0xf]
        %v642 = vld [vmem:[%s594] sm:$0xf]
        %v643 = vld [vmem:[%s594 + $0x4] sm:$0xf]
        %v644 = vld [vmem:[%s594 + $0x8] sm:$0xf]
        %v645 = vld [vmem:[%s594 + $0xc] sm:$0xf]
        %v646 = vld [vmem:[%s594 + $0x10] sm:$0xf]
        %v647 = vld [vmem:[%s594 + $0x14] sm:$0xf]
        %v648 = vld [vmem:[%s594 + $0x18] sm:$0xf]
        %v649 = vld [vmem:[%s594 + $0x1c] sm:$0xf]
        %v650 = vld [vmem:[%s594 + $0x20] sm:$0xf]
        %v651 = vld [vmem:[%s594 + $0x24] sm:$0xf]
        %v652 = vld [vmem:[%s594 + $0x28] sm:$0xf]
        %v653 = vld [vmem:[%s594 + $0x2c] sm:$0xf]
        %v654 = vld [vmem:[%s594 + $0x30] sm:$0xf]
        %v655 = vld [vmem:[%s594 + $0x34] sm:$0xf]
        %v656 = vld [vmem:[%s594 + $0x38] sm:$0xf]
        %v657 = vld [vmem:[%s594 + $0x3c] sm:$0xf]
        %v658 = vld [vmem:[%s594 + $0x40] sm:$0xf]
        %v659 = vld [vmem:[%s594 + $0x44] sm:$0xf]
        %v660 = vld [vmem:[%s594 + $0x48] sm:$0xf]
        %v661 = vld [vmem:[%s594 + $0x4c] sm:$0xf]
        %v662 = vld [vmem:[%s594 + $0x50] sm:$0xf]
        %v663 = vld [vmem:[%s594 + $0x54] sm:$0xf]
        %v664 = vld [vmem:[%s594 + $0x58] sm:$0xf]
        %v665 = vld [vmem:[%s594 + $0x5c] sm:$0xf]
        %v666 = vld [vmem:[%s594 + $0x60] sm:$0xf]
        %v667 = vld [vmem:[%s594 + $0x64] sm:$0xf]
        %v668 = vld [vmem:[%s594 + $0x68] sm:$0xf]
        %v669 = vld [vmem:[%s594 + $0x6c] sm:$0xf]
        %v670 = vld [vmem:[%s594 + $0x70] sm:$0xf]
        %v671 = vld [vmem:[%s594 + $0x74] sm:$0xf]
        %v672 = vld [vmem:[%s594 + $0x78] sm:$0xf]
        %v673 = vld [vmem:[%s594 + $0x7c] sm:$0xf]
        %vm674 = vcmask 60416
        %675 = vst.msk [vmem:[#allocation2] sm:$0xf] %vm674, %v642
        %676 = vst.msk [vmem:[#allocation2 + $0x4] sm:$0xf] %vm674, %v643
        %677 = vst.msk [vmem:[#allocation2 + $0x8] sm:$0xf] %vm674, %v644
        %678 = vst.msk [vmem:[#allocation2 + $0xc] sm:$0xf] %vm674, %v645
        %679 = vst.msk [vmem:[#allocation2 + $0x10] sm:$0xf] %vm674, %v646
        %680 = vst.msk [vmem:[#allocation2 + $0x14] sm:$0xf] %vm674, %v647
        %681 = vst.msk [vmem:[#allocation2 + $0x18] sm:$0xf] %vm674, %v648
        %682 = vst.msk [vmem:[#allocation2 + $0x1c] sm:$0xf] %vm674, %v649
        %683 = vst.msk [vmem:[#allocation2 + $0x20] sm:$0xf] %vm674, %v650
        %684 = vst.msk [vmem:[#allocation2 + $0x24] sm:$0xf] %vm674, %v651
        %685 = vst.msk [vmem:[#allocation2 + $0x28] sm:$0xf] %vm674, %v652
        %686 = vst.msk [vmem:[#allocation2 + $0x2c] sm:$0xf] %vm674, %v653
        %687 = vst.msk [vmem:[#allocation2 + $0x30] sm:$0xf] %vm674, %v654
        %688 = vst.msk [vmem:[#allocation2 + $0x34] sm:$0xf] %vm674, %v655
        %689 = vst.msk [vmem:[#allocation2 + $0x38] sm:$0xf] %vm674, %v656
        %690 = vst.msk [vmem:[#allocation2 + $0x3c] sm:$0xf] %vm674, %v657
        %691 = vst.msk [vmem:[#allocation2 + $0x48] sm:$0xf] %vm674, %v658
        %692 = vst.msk [vmem:[#allocation2 + $0x4c] sm:$0xf] %vm674, %v659
        %693 = vst.msk [vmem:[#allocation2 + $0x50] sm:$0xf] %vm674, %v660
        %694 = vst.msk [vmem:[#allocation2 + $0x54] sm:$0xf] %vm674, %v661
        %695 = vst.msk [vmem:[#allocation2 + $0x58] sm:$0xf] %vm674, %v662
        %696 = vst.msk [vmem:[#allocation2 + $0x5c] sm:$0xf] %vm674, %v663
        %697 = vst.msk [vmem:[#allocation2 + $0x60] sm:$0xf] %vm674, %v664
        %698 = vst.msk [vmem:[#allocation2 + $0x64] sm:$0xf] %vm674, %v665
        %699 = vst.msk [vmem:[#allocation2 + $0x68] sm:$0xf] %vm674, %v666
        %700 = vst.msk [vmem:[#allocation2 + $0x6c] sm:$0xf] %vm674, %v667
        %701 = vst.msk [vmem:[#allocation2 + $0x70] sm:$0xf] %vm674, %v668
        %702 = vst.msk [vmem:[#allocation2 + $0x74] sm:$0xf] %vm674, %v669
        %703 = vst.msk [vmem:[#allocation2 + $0x78] sm:$0xf] %vm674, %v670
        %704 = vst.msk [vmem:[#allocation2 + $0x7c] sm:$0xf] %vm674, %v671
        %705 = vst.msk [vmem:[#allocation2 + $0x80] sm:$0xf] %vm674, %v672
        %706 = vst.msk [vmem:[#allocation2 + $0x84] sm:$0xf] %vm674, %v673
        %v707 = vld [vmem:[%s601] sm:$0xf]
        %v708 = vld [vmem:[%s601 + $0x4] sm:$0xf]
        %v709 = vld [vmem:[%s601 + $0x8] sm:$0xf]
        %v710 = vld [vmem:[%s601 + $0xc] sm:$0xf]
        %711 = vst.msk [vmem:[#allocation2 + $0x40] sm:$0xf] %vm674, %v707
        %712 = vst.msk [vmem:[#allocation2 + $0x44] sm:$0xf] %vm674, %v708
        %713 = vst.msk [vmem:[#allocation2 + $0x88] sm:$0xf] %vm674, %v709
        %714 = vst.msk [vmem:[#allocation2 + $0x8c] sm:$0xf] %vm674, %v710
        %v715 = vld [vmem:[#allocation2] sm:$0xf]
        %v716 = vld [vmem:[#allocation2 + $0x4] sm:$0xf]
        %v717 = vld [vmem:[#allocation2 + $0x8] sm:$0xf]
        %v718 = vld [vmem:[#allocation2 + $0xc] sm:$0xf]
        %v719 = vld [vmem:[#allocation2 + $0x10] sm:$0xf]
        %v720 = vld [vmem:[#allocation2 + $0x14] sm:$0xf]
        %v721 = vld [vmem:[#allocation2 + $0x18] sm:$0xf]
        %v722 = vld [vmem:[#allocation2 + $0x1c] sm:$0xf]
        %v723 = vld [vmem:[#allocation2 + $0x20] sm:$0xf]
        %v724 = vld [vmem:[#allocation2 + $0x24] sm:$0xf]
        %v725 = vld [vmem:[#allocation2 + $0x28] sm:$0xf]
        %v726 = vld [vmem:[#allocation2 + $0x2c] sm:$0xf]
        %v727 = vld [vmem:[#allocation2 + $0x30] sm:$0xf]
        %v728 = vld [vmem:[#allocation2 + $0x34] sm:$0xf]
        %v729 = vld [vmem:[#allocation2 + $0x38] sm:$0xf]
        %v730 = vld [vmem:[#allocation2 + $0x3c] sm:$0xf]
        %v731 = vld [vmem:[#allocation2 + $0x40] sm:$0xf]
        %s732 = scalar_lea.vmem [#allocation2], 72
        %v733 = vld [vmem:[%s732] sm:$0xf]
        %v734 = vld [vmem:[%s732 + $0x4] sm:$0xf]
        %v735 = vld [vmem:[%s732 + $0x8] sm:$0xf]
        %v736 = vld [vmem:[%s732 + $0xc] sm:$0xf]
        %v737 = vld [vmem:[%s732 + $0x10] sm:$0xf]
        %v738 = vld [vmem:[%s732 + $0x14] sm:$0xf]
        %v739 = vld [vmem:[%s732 + $0x18] sm:$0xf]
        %v740 = vld [vmem:[%s732 + $0x1c] sm:$0xf]
        %v741 = vld [vmem:[%s732 + $0x20] sm:$0xf]
        %v742 = vld [vmem:[%s732 + $0x24] sm:$0xf]
        %v743 = vld [vmem:[%s732 + $0x28] sm:$0xf]
        %v744 = vld [vmem:[%s732 + $0x2c] sm:$0xf]
        %v745 = vld [vmem:[%s732 + $0x30] sm:$0xf]
        %v746 = vld [vmem:[%s732 + $0x34] sm:$0xf]
        %v747 = vld [vmem:[%s732 + $0x38] sm:$0xf]
        %v748 = vld [vmem:[%s732 + $0x3c] sm:$0xf]
        %v749 = vld [vmem:[%s732 + $0x40] sm:$0xf]
        %v750 = vld [vmem:[#allocation2 + $0x44] sm:$0x1]
        %v768 = vunpack.c.l.b16 %v715
        %v769 = vunpack.c.l.b16 %v716
        %v770 = vunpack.c.l.b16 %v717
        %v771 = vunpack.c.l.b16 %v718
        %v772 = vunpack.c.l.b16 %v719
        %v773 = vunpack.c.l.b16 %v720
        %v774 = vunpack.c.l.b16 %v721
        %v775 = vunpack.c.l.b16 %v722
        %v776 = vunpack.c.l.b16 %v723
        %v777 = vunpack.c.l.b16 %v724
        %v778 = vunpack.c.l.b16 %v725
        %v779 = vunpack.c.l.b16 %v726
        %v780 = vunpack.c.l.b16 %v727
        %v781 = vunpack.c.l.b16 %v728
        %v782 = vunpack.c.l.b16 %v729
        %v783 = vunpack.c.l.b16 %v730
        %v784 = vunpack.c.l.b16 %v731
        %v785 = vpack.c.b16 %v769, %v768
        %v786 = vpack.c.b16 %v771, %v770
        %v787 = vpack.c.b16 %v773, %v772
        %v788 = vpack.c.b16 %v775, %v774
        %v789 = vpack.c.b16 %v777, %v776
        %v790 = vpack.c.b16 %v779, %v778
        %v791 = vpack.c.b16 %v781, %v780
        %v792 = vpack.c.b16 %v783, %v782
        %v793 = vpack.c.b16 %v784, %v784
        %v811 = vunpack.c.l.b16 %v733
        %v812 = vunpack.c.l.b16 %v734
        %v813 = vunpack.c.l.b16 %v735
        %v814 = vunpack.c.l.b16 %v736
        %v815 = vunpack.c.l.b16 %v737
        %v816 = vunpack.c.l.b16 %v738
        %v817 = vunpack.c.l.b16 %v739
        %v818 = vunpack.c.l.b16 %v740
        %v819 = vunpack.c.l.b16 %v741
        %v820 = vunpack.c.l.b16 %v742
        %v821 = vunpack.c.l.b16 %v743
        %v822 = vunpack.c.l.b16 %v744
        %v823 = vunpack.c.l.b16 %v745
        %v824 = vunpack.c.l.b16 %v746
        %v825 = vunpack.c.l.b16 %v747
        %v826 = vunpack.c.l.b16 %v748
        %v827 = vunpack.c.l.b16 %v749
        %v828 = vpack.c.b16 %v812, %v811
        %v829 = vpack.c.b16 %v814, %v813
        %v830 = vpack.c.b16 %v816, %v815
        %v831 = vpack.c.b16 %v818, %v817
        %v832 = vpack.c.b16 %v820, %v819
        %v833 = vpack.c.b16 %v822, %v821
        %v834 = vpack.c.b16 %v824, %v823
        %v835 = vpack.c.b16 %v826, %v825
        %v836 = vpack.c.b16 %v827, %v827
        %837 = vrot.lane.b32.xlu0 %v828, 8
        %v838 = vpop.permute.xlu0 %837
        %839 = vrot.lane.b32.xlu0 %v829, 8
        %v840 = vpop.permute.xlu0 %839
        %841 = vrot.lane.b32.xlu0 %v830, 8
        %v842 = vpop.permute.xlu0 %841
        %843 = vrot.lane.b32.xlu0 %v831, 8
        %v844 = vpop.permute.xlu0 %843
        %845 = vrot.lane.b32.xlu0 %v832, 8
        %v846 = vpop.permute.xlu0 %845
        %847 = vrot.lane.b32.xlu0 %v833, 8
        %v848 = vpop.permute.xlu0 %847
        %849 = vrot.lane.b32.xlu0 %v834, 8
        %v850 = vpop.permute.xlu0 %849
        %851 = vrot.lane.b32.xlu0 %v835, 8
        %v852 = vpop.permute.xlu0 %851
        %853 = vrot.lane.b32.xlu0 %v836, 8
        %v854 = vpop.permute.xlu0 %853
        %v856 = vunpack.c.l.b16 %v750
        %v857 = vpack.c.b16 %v856, %v784
        %vm858 = vsmask.f32 7424
        %v860 = vshrl.u32 %v785, 16
        %v862 = vshll.u32 %v785, 16
        %v864 = vrot.slane %v862, 1
        %v865 = vor.u32 %v860, %v864
        %v867 = vshll.u32 %v786, 16
        %v869 = vrot.slane %v867, 1
        %v870 = vsel %vm858, %v865, %v869
        %v871 = vshrl.u32 %v786, 16
        %v873 = vor.u32 %v871, %v869
        %v875 = vshll.u32 %v787, 16
        %v877 = vrot.slane %v875, 1
        %v878 = vsel %vm858, %v873, %v877
        %v879 = vshrl.u32 %v787, 16
        %v881 = vor.u32 %v879, %v877
        %v883 = vshll.u32 %v788, 16
        %v885 = vrot.slane %v883, 1
        %v886 = vsel %vm858, %v881, %v885
        %v887 = vshrl.u32 %v788, 16
        %v889 = vor.u32 %v887, %v885
        %v891 = vshll.u32 %v789, 16
        %v893 = vrot.slane %v891, 1
        %v894 = vsel %vm858, %v889, %v893
        %v895 = vshrl.u32 %v789, 16
        %v897 = vor.u32 %v895, %v893
        %v899 = vshll.u32 %v790, 16
        %v901 = vrot.slane %v899, 1
        %v902 = vsel %vm858, %v897, %v901
        %v903 = vshrl.u32 %v790, 16
        %v905 = vor.u32 %v903, %v901
        %v907 = vshll.u32 %v791, 16
        %v909 = vrot.slane %v907, 1
        %v910 = vsel %vm858, %v905, %v909
        %v911 = vshrl.u32 %v791, 16
        %v913 = vor.u32 %v911, %v909
        %v915 = vshll.u32 %v792, 16
        %v917 = vrot.slane %v915, 1
        %v918 = vsel %vm858, %v913, %v917
        %v919 = vshrl.u32 %v792, 16
        %v921 = vor.u32 %v919, %v917
        %v923 = vshll.u32 %v857, 16
        %v925 = vrot.slane %v923, 1
        %v926 = vsel %vm858, %v921, %v925
        %v927 = vshrl.u32 %v857, 16
        %v929 = vor.u32 %v927, %v925
        %930 = vrot.lane.b32.xlu0 %v870, 16
        %v931 = vpop.permute.xlu0 %930
        %932 = vrot.lane.b32.xlu0 %v878, 16
        %v933 = vpop.permute.xlu0 %932
        %934 = vrot.lane.b32.xlu0 %v886, 16
        %v935 = vpop.permute.xlu0 %934
        %936 = vrot.lane.b32.xlu0 %v894, 16
        %v937 = vpop.permute.xlu0 %936
        %938 = vrot.lane.b32.xlu0 %v902, 16
        %v939 = vpop.permute.xlu0 %938
        %940 = vrot.lane.b32.xlu0 %v910, 16
        %v941 = vpop.permute.xlu0 %940
        %942 = vrot.lane.b32.xlu0 %v918, 16
        %v943 = vpop.permute.xlu0 %942
        %944 = vrot.lane.b32.xlu0 %v926, 16
        %v945 = vpop.permute.xlu0 %944
        %946 = vrot.lane.b32.xlu0 %v929, 16
        %v947 = vpop.permute.xlu0 %946
        %vm948 = vcmask 64512
        %v950 = vsel %vm948, %v785, %v838
        %v952 = vsel %vm948, %v786, %v840
        %v954 = vsel %vm948, %v787, %v842
        %v956 = vsel %vm948, %v788, %v844
        %v958 = vsel %vm948, %v789, %v846
        %v960 = vsel %vm948, %v790, %v848
        %v962 = vsel %vm948, %v791, %v850
        %v964 = vsel %vm948, %v792, %v852
        %v967 = vsel %vm948, %v793, %v854
        %vm968 = vcmask 130048
        %v970 = vsel %vm968, %v950, %v931
        %v972 = vsel %vm968, %v952, %v933
        %v974 = vsel %vm968, %v954, %v935
        %v976 = vsel %vm968, %v956, %v937
        %v978 = vsel %vm968, %v958, %v939
        %v980 = vsel %vm968, %v960, %v941
        %v982 = vsel %vm968, %v962, %v943
        %v984 = vsel %vm968, %v964, %v945
        %v986 = vsel %vm968, %v967, %v947
        %v987 = vld [vmem:[%s2] sm:$0xf]
        %v988 = vld [vmem:[%s2 + $0x4] sm:$0xf]
        %v989 = vld [vmem:[%s2 + $0x8] sm:$0xf]
        %v993 = vunpack.c.l.b16 %v987
        %v994 = vunpack.c.l.b16 %v988
        %v995 = vunpack.c.l.b16 %v989
        %v996 = vpack.c.b16 %v994, %v993
        %v997 = vpack.c.b16 %v995, %v995
        %vm999 = vcmask 195584
        %v1000 = vsel %vm999, %v970, 0
        %v1002 = vsel %vm999, %v972, 0
        %v1004 = vsel %vm999, %v974, 0
        %v1006 = vsel %vm999, %v976, 0
        %v1008 = vsel %vm999, %v978, 0
        %v1010 = vsel %vm999, %v980, 0
        %v1012 = vsel %vm999, %v982, 0
        %v1014 = vsel %vm999, %v984, 0
        %v1016 = vsel %vm999, %v986, 0
        %vm1018 = vcmask 1043456
        %v1020 = vsel %vm1018, %v997, 0
        %1022 = vmatpush.bf16.msra.mxu0 0
        %1023 = vmatpush.bf16.msra.mxu0 0
        %1024 = vmatpush.bf16.msra.mxu0 0
        %1025 = vmatpush.bf16.msra.mxu0 0
        %1026 = vmatpush.bf16.msra.mxu0 0
        %1027 = vmatpush.bf16.msra.mxu0 0
        %1028 = vmatpush.bf16.msra.mxu0 %v1020
        %1029 = vmatpush.bf16.msra.mxu0 %v996
        %1030 = vmatmul.bf16.gmra.mxu0 %v1000
        %v1031 = vpop.f32.mrf.mxu0
        %v1032 = vadd.f32 0.0, %v1031
        %v1033 = vpop.f32.mrf.mxu0
        %v1034 = vadd.f32 0.0, %v1033
        %1035 = vmatmul.bf16.gmra.mxu0 %v1002
        %v1036 = vpop.f32.mrf.mxu0
        %v1037 = vadd.f32 0.0, %v1036
        %v1038 = vpop.f32.mrf.mxu0
        %v1039 = vadd.f32 0.0, %v1038
        %1040 = vmatmul.bf16.gmra.mxu0 %v1004
        %v1041 = vpop.f32.mrf.mxu0
        %v1042 = vadd.f32 0.0, %v1041
        %v1043 = vpop.f32.mrf.mxu0
        %v1044 = vadd.f32 0.0, %v1043
        %1045 = vmatmul.bf16.gmra.mxu0 %v1006
        %v1046 = vpop.f32.mrf.mxu0
        %v1047 = vadd.f32 0.0, %v1046
        %v1048 = vpop.f32.mrf.mxu0
        %v1049 = vadd.f32 0.0, %v1048
        %1050 = vmatmul.bf16.gmra.mxu0 %v1008
        %v1051 = vpop.f32.mrf.mxu0
        %v1052 = vadd.f32 0.0, %v1051
        %v1053 = vpop.f32.mrf.mxu0
        %v1054 = vadd.f32 0.0, %v1053
        %1055 = vmatmul.bf16.gmra.mxu0 %v1010
        %v1056 = vpop.f32.mrf.mxu0
        %v1057 = vadd.f32 0.0, %v1056
        %v1058 = vpop.f32.mrf.mxu0
        %v1059 = vadd.f32 0.0, %v1058
        %1060 = vmatmul.bf16.gmra.mxu0 %v1012
        %v1061 = vpop.f32.mrf.mxu0
        %v1062 = vadd.f32 0.0, %v1061
        %v1063 = vpop.f32.mrf.mxu0
        %v1064 = vadd.f32 0.0, %v1063
        %1065 = vmatmul.bf16.gmra.mxu0 %v1014
        %v1066 = vpop.f32.mrf.mxu0
        %v1067 = vadd.f32 0.0, %v1066
        %v1068 = vpop.f32.mrf.mxu0
        %v1069 = vadd.f32 0.0, %v1068
        %1070 = vmatmul.bf16.gmra.mxu0 %v1016
        %v1071 = vpop.f32.mrf.mxu0
        %v1072 = vadd.f32 0.0, %v1071
        %v1073 = vpop.f32.mrf.mxu0
        %1074 = vdwg.mxu0
        %v1075 = vperm.slane %v641, 0
        %v1076 = vmul.f32 %v1032, %v1075
        %v1077 = vmul.f32 %v1034, %v1075
        %v1078 = vmul.f32 %v1037, %v1075
        %v1079 = vmul.f32 %v1039, %v1075
        %v1080 = vmul.f32 %v1042, %v1075
        %v1081 = vmul.f32 %v1044, %v1075
        %v1082 = vmul.f32 %v1047, %v1075
        %v1083 = vmul.f32 %v1049, %v1075
        %v1084 = vmul.f32 %v1052, %v1075
        %v1085 = vmul.f32 %v1054, %v1075
        %v1086 = vmul.f32 %v1057, %v1075
        %v1087 = vmul.f32 %v1059, %v1075
        %v1088 = vmul.f32 %v1062, %v1075
        %v1089 = vmul.f32 %v1064, %v1075
        %v1090 = vmul.f32 %v1067, %v1075
        %v1091 = vmul.f32 %v1069, %v1075
        %v1092 = vmul.f32 %v1072, %v1075
        %v1093 = vperm.slane %v641, 1
        %v1094 = vadd.f32 %v1076, %v1093
        %v1095 = vadd.f32 %v1077, %v1093
        %v1096 = vadd.f32 %v1078, %v1093
        %v1097 = vadd.f32 %v1079, %v1093
        %v1098 = vadd.f32 %v1080, %v1093
        %v1099 = vadd.f32 %v1081, %v1093
        %v1100 = vadd.f32 %v1082, %v1093
        %v1101 = vadd.f32 %v1083, %v1093
        %v1102 = vadd.f32 %v1084, %v1093
        %v1103 = vadd.f32 %v1085, %v1093
        %v1104 = vadd.f32 %v1086, %v1093
        %v1105 = vadd.f32 %v1087, %v1093
        %v1106 = vadd.f32 %v1088, %v1093
        %v1107 = vadd.f32 %v1089, %v1093
        %v1108 = vadd.f32 %v1090, %v1093
        %v1109 = vadd.f32 %v1091, %v1093
        %v1110 = vadd.f32 %v1092, %v1093
        %v1111 = vmax.f32 %v1094, 0.0
        %v1112 = vmax.f32 %v1095, 0.0
        %v1113 = vmax.f32 %v1096, 0.0
        %v1114 = vmax.f32 %v1097, 0.0
        %v1115 = vmax.f32 %v1098, 0.0
        %v1116 = vmax.f32 %v1099, 0.0
        %v1117 = vmax.f32 %v1100, 0.0
        %v1118 = vmax.f32 %v1101, 0.0
        %v1119 = vmax.f32 %v1102, 0.0
        %v1120 = vmax.f32 %v1103, 0.0
        %v1121 = vmax.f32 %v1104, 0.0
        %v1122 = vmax.f32 %v1105, 0.0
        %v1123 = vmax.f32 %v1106, 0.0
        %v1124 = vmax.f32 %v1107, 0.0
        %v1125 = vmax.f32 %v1108, 0.0
        %v1126 = vmax.f32 %v1109, 0.0
        %v1127 = vmax.f32 %v1110, 0.0
        %s1128 = smul.u32 %s25, 128
        %s1129 = ssub.s32 %s1128, 1
        %v1130 = vlaneseq
        %v1131 = vshrl.u32 %v1130, 7
        %v1132 = vadd.s32 %v1131, 8
        %v1133 = vadd.s32 %v1131, 16
        %v1134 = vadd.s32 %v1131, 24
        %v1135 = vadd.s32 %v1131, 32
        %v1136 = vadd.s32 %v1131, 40
        %v1137 = vadd.s32 %v1131, 48
        %v1138 = vadd.s32 %v1131, 56
        %v1139 = vadd.s32 %v1131, 64
        %v1140 = vadd.s32 %v1131, 72
        %v1141 = vadd.s32 %v1131, 80
        %v1142 = vadd.s32 %v1131, 88
        %v1143 = vadd.s32 %v1131, 96
        %v1144 = vadd.s32 %v1131, 104
        %v1145 = vadd.s32 %v1131, 112
        %v1146 = vadd.s32 %v1131, 120
        %v1147 = vadd.s32 %v1131, 128
        %v1148 = vstv %s1129
        %v1149 = vadd.s32 %v1148, %v1131
        %v1150 = vadd.s32 %v1148, %v1132
        %v1151 = vadd.s32 %v1148, %v1133
        %v1152 = vadd.s32 %v1148, %v1134
        %v1153 = vadd.s32 %v1148, %v1135
        %v1154 = vadd.s32 %v1148, %v1136
        %v1155 = vadd.s32 %v1148, %v1137
        %v1156 = vadd.s32 %v1148, %v1138
        %v1157 = vadd.s32 %v1148, %v1139
        %v1158 = vadd.s32 %v1148, %v1140
        %v1159 = vadd.s32 %v1148, %v1141
        %v1160 = vadd.s32 %v1148, %v1142
        %v1161 = vadd.s32 %v1148, %v1143
        %v1162 = vadd.s32 %v1148, %v1144
        %v1163 = vadd.s32 %v1148, %v1145
        %v1164 = vadd.s32 %v1148, %v1146
        %v1165 = vadd.s32 %v1148, %v1147
        %vm1166 = vcmp.ge.s32.totalorder %v1149, 0
        %vm1167 = vcmp.ge.s32.totalorder %v1150, 0
        %vm1168 = vcmp.ge.s32.totalorder %v1151, 0
        %vm1169 = vcmp.ge.s32.totalorder %v1152, 0
        %vm1170 = vcmp.ge.s32.totalorder %v1153, 0
        %vm1171 = vcmp.ge.s32.totalorder %v1154, 0
        %vm1172 = vcmp.ge.s32.totalorder %v1155, 0
        %vm1173 = vcmp.ge.s32.totalorder %v1156, 0
        %vm1174 = vcmp.ge.s32.totalorder %v1157, 0
        %vm1175 = vcmp.ge.s32.totalorder %v1158, 0
        %vm1176 = vcmp.ge.s32.totalorder %v1159, 0
        %vm1177 = vcmp.ge.s32.totalorder %v1160, 0
        %vm1178 = vcmp.ge.s32.totalorder %v1161, 0
        %vm1179 = vcmp.ge.s32.totalorder %v1162, 0
        %vm1180 = vcmp.ge.s32.totalorder %v1163, 0
        %vm1181 = vcmp.ge.s32.totalorder %v1164, 0
        %vm1182 = vcmp.ge.s32.totalorder %v1165, 0
        %vm1183 = vcmp.lt.s32.totalorder %v1149, 8
        %vm1184 = vcmp.lt.s32.totalorder %v1150, 8
        %vm1185 = vcmp.lt.s32.totalorder %v1151, 8
        %vm1186 = vcmp.lt.s32.totalorder %v1152, 8
        %vm1187 = vcmp.lt.s32.totalorder %v1153, 8
        %vm1188 = vcmp.lt.s32.totalorder %v1154, 8
        %vm1189 = vcmp.lt.s32.totalorder %v1155, 8
        %vm1190 = vcmp.lt.s32.totalorder %v1156, 8
        %vm1191 = vcmp.lt.s32.totalorder %v1157, 8
        %vm1192 = vcmp.lt.s32.totalorder %v1158, 8
        %vm1193 = vcmp.lt.s32.totalorder %v1159, 8
        %vm1194 = vcmp.lt.s32.totalorder %v1160, 8
        %vm1195 = vcmp.lt.s32.totalorder %v1161, 8
        %vm1196 = vcmp.lt.s32.totalorder %v1162, 8
        %vm1197 = vcmp.lt.s32.totalorder %v1163, 8
        %vm1198 = vcmp.lt.s32.totalorder %v1164, 8
        %vm1199 = vcmp.lt.s32.totalorder %v1165, 8
        %vm1200 = vmand %vm1166, %vm1183
        %vm1201 = vmand %vm1167, %vm1184
        %vm1202 = vmand %vm1168, %vm1185
        %vm1203 = vmand %vm1169, %vm1186
        %vm1204 = vmand %vm1170, %vm1187
        %vm1205 = vmand %vm1171, %vm1188
        %vm1206 = vmand %vm1172, %vm1189
        %vm1207 = vmand %vm1173, %vm1190
        %vm1208 = vmand %vm1174, %vm1191
        %vm1209 = vmand %vm1175, %vm1192
        %vm1210 = vmand %vm1176, %vm1193
        %vm1211 = vmand %vm1177, %vm1194
        %vm1212 = vmand %vm1178, %vm1195
        %vm1213 = vmand %vm1179, %vm1196
        %vm1214 = vmand %vm1180, %vm1197
        %vm1215 = vmand %vm1181, %vm1198
        %vm1216 = vmand %vm1182, %vm1199
        %v1217 = vsel %vm1200, 1, 0
        %v1218 = vsel %vm1201, 1, 0
        %v1219 = vsel %vm1202, 1, 0
        %v1220 = vsel %vm1203, 1, 0
        %v1221 = vsel %vm1204, 1, 0
        %v1222 = vsel %vm1205, 1, 0
        %v1223 = vsel %vm1206, 1, 0
        %v1224 = vsel %vm1207, 1, 0
        %v1225 = vsel %vm1208, 1, 0
        %v1226 = vsel %vm1209, 1, 0
        %v1227 = vsel %vm1210, 1, 0
        %v1228 = vsel %vm1211, 1, 0
        %v1229 = vsel %vm1212, 1, 0
        %v1230 = vsel %vm1213, 1, 0
        %v1231 = vsel %vm1214, 1, 0
        %v1232 = vsel %vm1215, 1, 0
        %v1233 = vsel %vm1216, 1, 0
        %vm1234 = vcmp.eq.s32.totalorder %v1217, 1
        %vm1235 = vcmp.eq.s32.totalorder %v1218, 1
        %vm1236 = vcmp.eq.s32.totalorder %v1219, 1
        %vm1237 = vcmp.eq.s32.totalorder %v1220, 1
        %vm1238 = vcmp.eq.s32.totalorder %v1221, 1
        %vm1239 = vcmp.eq.s32.totalorder %v1222, 1
        %vm1240 = vcmp.eq.s32.totalorder %v1223, 1
        %vm1241 = vcmp.eq.s32.totalorder %v1224, 1
        %vm1242 = vcmp.eq.s32.totalorder %v1225, 1
        %vm1243 = vcmp.eq.s32.totalorder %v1226, 1
        %vm1244 = vcmp.eq.s32.totalorder %v1227, 1
        %vm1245 = vcmp.eq.s32.totalorder %v1228, 1
        %vm1246 = vcmp.eq.s32.totalorder %v1229, 1
        %vm1247 = vcmp.eq.s32.totalorder %v1230, 1
        %vm1248 = vcmp.eq.s32.totalorder %v1231, 1
        %vm1249 = vcmp.eq.s32.totalorder %v1232, 1
        %vm1250 = vcmp.eq.s32.totalorder %v1233, 1
        %v1251 = vsel %vm1234, %v1111, 0.0
        %v1252 = vsel %vm1235, %v1112, 0.0
        %v1253 = vsel %vm1236, %v1113, 0.0
        %v1254 = vsel %vm1237, %v1114, 0.0
        %v1255 = vsel %vm1238, %v1115, 0.0
        %v1256 = vsel %vm1239, %v1116, 0.0
        %v1257 = vsel %vm1240, %v1117, 0.0
        %v1258 = vsel %vm1241, %v1118, 0.0
        %v1259 = vsel %vm1242, %v1119, 0.0
        %v1260 = vsel %vm1243, %v1120, 0.0
        %v1261 = vsel %vm1244, %v1121, 0.0
        %v1262 = vsel %vm1245, %v1122, 0.0
        %v1263 = vsel %vm1246, %v1123, 0.0
        %v1264 = vsel %vm1247, %v1124, 0.0
        %v1265 = vsel %vm1248, %v1125, 0.0
        %v1266 = vsel %vm1249, %v1126, 0.0
        %v1267 = vsel %vm1250, %v1127, 0.0
        %v1268 = vpack.c.bf16 %v1251, %v1251
        %v1269 = vpack.c.bf16 %v1252, %v1252
        %v1270 = vpack.c.bf16 %v1253, %v1253
        %v1271 = vpack.c.bf16 %v1254, %v1254
        %v1272 = vpack.c.bf16 %v1255, %v1255
        %v1273 = vpack.c.bf16 %v1256, %v1256
        %v1274 = vpack.c.bf16 %v1257, %v1257
        %v1275 = vpack.c.bf16 %v1258, %v1258
        %v1276 = vpack.c.bf16 %v1259, %v1259
        %v1277 = vpack.c.bf16 %v1260, %v1260
        %v1278 = vpack.c.bf16 %v1261, %v1261
        %v1279 = vpack.c.bf16 %v1262, %v1262
        %v1280 = vpack.c.bf16 %v1263, %v1263
        %v1281 = vpack.c.bf16 %v1264, %v1264
        %v1282 = vpack.c.bf16 %v1265, %v1265
        %v1283 = vpack.c.bf16 %v1266, %v1266
        %v1284 = vpack.c.bf16 %v1267, %v1267
        %vm1285 = vcmask 125952
        %1286 = vst.msk [vmem:[#allocation3] sm:$0xf] %vm1285, %v1268
        %1287 = vst.msk [vmem:[#allocation3 + $0x4] sm:$0xf] %vm1285, %v1269
        %1288 = vst.msk [vmem:[#allocation3 + $0x8] sm:$0xf] %vm1285, %v1270
        %1289 = vst.msk [vmem:[#allocation3 + $0xc] sm:$0xf] %vm1285, %v1271
        %1290 = vst.msk [vmem:[#allocation3 + $0x10] sm:$0xf] %vm1285, %v1272
        %1291 = vst.msk [vmem:[#allocation3 + $0x14] sm:$0xf] %vm1285, %v1273
        %1292 = vst.msk [vmem:[#allocation3 + $0x18] sm:$0xf] %vm1285, %v1274
        %1293 = vst.msk [vmem:[#allocation3 + $0x1c] sm:$0xf] %vm1285, %v1275
        %1294 = vst.msk [vmem:[#allocation3 + $0x20] sm:$0xf] %vm1285, %v1276
        %1295 = vst.msk [vmem:[#allocation3 + $0x24] sm:$0xf] %vm1285, %v1277
        %1296 = vst.msk [vmem:[#allocation3 + $0x28] sm:$0xf] %vm1285, %v1278
        %1297 = vst.msk [vmem:[#allocation3 + $0x2c] sm:$0xf] %vm1285, %v1279
        %1298 = vst.msk [vmem:[#allocation3 + $0x30] sm:$0xf] %vm1285, %v1280
        %1299 = vst.msk [vmem:[#allocation3 + $0x34] sm:$0xf] %vm1285, %v1281
        %1300 = vst.msk [vmem:[#allocation3 + $0x38] sm:$0xf] %vm1285, %v1282
        %1301 = vst.msk [vmem:[#allocation3 + $0x3c] sm:$0xf] %vm1285, %v1283
        %1302 = vst.msk [vmem:[#allocation3 + $0x40] sm:$0xf] %vm1285, %v1284
        %v1303 = vld [vmem:[#allocation3] sm:$0xf]
        %v1304 = vld [vmem:[#allocation3 + $0x4] sm:$0xf]
        %v1305 = vld [vmem:[#allocation3 + $0x8] sm:$0xf]
        %v1306 = vld [vmem:[#allocation3 + $0xc] sm:$0xf]
        %v1307 = vld [vmem:[#allocation3 + $0x10] sm:$0xf]
        %v1308 = vld [vmem:[#allocation3 + $0x14] sm:$0xf]
        %v1309 = vld [vmem:[#allocation3 + $0x18] sm:$0xf]
        %v1310 = vld [vmem:[#allocation3 + $0x1c] sm:$0xf]
        %v1311 = vld [vmem:[#allocation3 + $0x20] sm:$0xf]
        %v1312 = vld [vmem:[#allocation3 + $0x24] sm:$0xf]
        %v1313 = vld [vmem:[#allocation3 + $0x28] sm:$0xf]
        %v1314 = vld [vmem:[#allocation3 + $0x2c] sm:$0xf]
        %v1315 = vld [vmem:[#allocation3 + $0x30] sm:$0xf]
        %v1316 = vld [vmem:[#allocation3 + $0x34] sm:$0xf]
        %v1317 = vld [vmem:[#allocation3 + $0x38] sm:$0xf]
        %v1318 = vld [vmem:[#allocation3 + $0x3c] sm:$0xf]
        %v1319 = vld [vmem:[#allocation3 + $0x40] sm:$0x1]
        %v1320 = vld [vmem:[#allocation3] sm:$0xe]
        %v1337 = vunpack.c.l.b16 %v1303
        %v1338 = vunpack.c.l.b16 %v1304
        %v1339 = vunpack.c.l.b16 %v1305
        %v1340 = vunpack.c.l.b16 %v1306
        %v1341 = vunpack.c.l.b16 %v1307
        %v1342 = vunpack.c.l.b16 %v1308
        %v1343 = vunpack.c.l.b16 %v1309
        %v1344 = vunpack.c.l.b16 %v1310
        %v1345 = vunpack.c.l.b16 %v1311
        %v1346 = vunpack.c.l.b16 %v1312
        %v1347 = vunpack.c.l.b16 %v1313
        %v1348 = vunpack.c.l.b16 %v1314
        %v1349 = vunpack.c.l.b16 %v1315
        %v1350 = vunpack.c.l.b16 %v1316
        %v1351 = vunpack.c.l.b16 %v1317
        %v1352 = vunpack.c.l.b16 %v1318
        %v1353 = vpack.c.b16 %v1338, %v1337
        %v1354 = vpack.c.b16 %v1340, %v1339
        %v1355 = vpack.c.b16 %v1342, %v1341
        %v1356 = vpack.c.b16 %v1344, %v1343
        %v1357 = vpack.c.b16 %v1346, %v1345
        %v1358 = vpack.c.b16 %v1348, %v1347
        %v1359 = vpack.c.b16 %v1350, %v1349
        %v1360 = vpack.c.b16 %v1352, %v1351
        %v1362 = vunpack.c.l.b16 %v1319
        %v1363 = vpack.c.b16 %v1362, %v1362
        %v1365 = vshrl.u32 %v1353, 16
        %v1367 = vshll.u32 %v1353, 16
        %v1369 = vrot.slane %v1367, 1
        %v1370 = vor.u32 %v1365, %v1369
        %v1372 = vshll.u32 %v1354, 16
        %v1374 = vrot.slane %v1372, 1
        %v1375 = vsel %vm858, %v1370, %v1374
        %v1376 = vshrl.u32 %v1354, 16
        %v1378 = vor.u32 %v1376, %v1374
        %v1380 = vshll.u32 %v1355, 16
        %v1382 = vrot.slane %v1380, 1
        %v1383 = vsel %vm858, %v1378, %v1382
        %v1384 = vshrl.u32 %v1355, 16
        %v1386 = vor.u32 %v1384, %v1382
        %v1388 = vshll.u32 %v1356, 16
        %v1390 = vrot.slane %v1388, 1
        %v1391 = vsel %vm858, %v1386, %v1390
        %v1392 = vshrl.u32 %v1356, 16
        %v1394 = vor.u32 %v1392, %v1390
        %v1396 = vshll.u32 %v1357, 16
        %v1398 = vrot.slane %v1396, 1
        %v1399 = vsel %vm858, %v1394, %v1398
        %v1400 = vshrl.u32 %v1357, 16
        %v1402 = vor.u32 %v1400, %v1398
        %v1404 = vshll.u32 %v1358, 16
        %v1406 = vrot.slane %v1404, 1
        %v1407 = vsel %vm858, %v1402, %v1406
        %v1408 = vshrl.u32 %v1358, 16
        %v1410 = vor.u32 %v1408, %v1406
        %v1412 = vshll.u32 %v1359, 16
        %v1414 = vrot.slane %v1412, 1
        %v1415 = vsel %vm858, %v1410, %v1414
        %v1416 = vshrl.u32 %v1359, 16
        %v1418 = vor.u32 %v1416, %v1414
        %v1420 = vshll.u32 %v1360, 16
        %v1422 = vrot.slane %v1420, 1
        %v1423 = vsel %vm858, %v1418, %v1422
        %v1424 = vshrl.u32 %v1360, 16
        %v1426 = vor.u32 %v1424, %v1422
        %v1428 = vshll.u32 %v1363, 16
        %v1430 = vrot.slane %v1428, 1
        %v1431 = vsel %vm858, %v1426, %v1430
        %1432 = vrot.lane.b32.xlu0 %v1375, 16
        %v1433 = vpop.permute.xlu0 %1432
        %1434 = vrot.lane.b32.xlu0 %v1383, 16
        %v1435 = vpop.permute.xlu0 %1434
        %1436 = vrot.lane.b32.xlu0 %v1391, 16
        %v1437 = vpop.permute.xlu0 %1436
        %1438 = vrot.lane.b32.xlu0 %v1399, 16
        %v1439 = vpop.permute.xlu0 %1438
        %1440 = vrot.lane.b32.xlu0 %v1407, 16
        %v1441 = vpop.permute.xlu0 %1440
        %1442 = vrot.lane.b32.xlu0 %v1415, 16
        %v1443 = vpop.permute.xlu0 %1442
        %1444 = vrot.lane.b32.xlu0 %v1423, 16
        %v1445 = vpop.permute.xlu0 %1444
        %1446 = vrot.lane.b32.xlu0 %v1431, 16
        %v1447 = vpop.permute.xlu0 %1446
        %v1449 = vunpack.c.l.b16 %v1320
        %v1450 = vpack.c.b16 %v1338, %v1449
        %vm1451 = vcmask 1046528
        %v1452 = vrot.slane %v1450, 1
        %v1453 = vrot.slane %v1354, 1
        %v1454 = vsel %vm1451, %v1452, %v1453
        %v1455 = vrot.slane %v1355, 1
        %v1456 = vsel %vm1451, %v1453, %v1455
        %v1457 = vrot.slane %v1356, 1
        %v1458 = vsel %vm1451, %v1455, %v1457
        %v1459 = vrot.slane %v1357, 1
        %v1460 = vsel %vm1451, %v1457, %v1459
        %v1461 = vrot.slane %v1358, 1
        %v1462 = vsel %vm1451, %v1459, %v1461
        %v1463 = vrot.slane %v1359, 1
        %v1464 = vsel %vm1451, %v1461, %v1463
        %v1465 = vrot.slane %v1360, 1
        %v1466 = vsel %vm1451, %v1463, %v1465
        %v1467 = vrot.slane %v1363, 1
        %v1468 = vsel %vm1451, %v1465, %v1467
        %1469 = vrot.lane.b32.xlu0 %v1454, 32
        %v1470 = vpop.permute.xlu0 %1469
        %1471 = vrot.lane.b32.xlu0 %v1456, 32
        %v1472 = vpop.permute.xlu0 %1471
        %1473 = vrot.lane.b32.xlu0 %v1458, 32
        %v1474 = vpop.permute.xlu0 %1473
        %1475 = vrot.lane.b32.xlu0 %v1460, 32
        %v1476 = vpop.permute.xlu0 %1475
        %1477 = vrot.lane.b32.xlu0 %v1462, 32
        %v1478 = vpop.permute.xlu0 %1477
        %1479 = vrot.lane.b32.xlu0 %v1464, 32
        %v1480 = vpop.permute.xlu0 %1479
        %1481 = vrot.lane.b32.xlu0 %v1466, 32
        %v1482 = vpop.permute.xlu0 %1481
        %1483 = vrot.lane.b32.xlu0 %v1468, 32
        %v1484 = vpop.permute.xlu0 %1483
        %v1486 = vsel %vm968, %v1353, %v1433
        %v1488 = vsel %vm968, %v1354, %v1435
        %v1490 = vsel %vm968, %v1355, %v1437
        %v1492 = vsel %vm968, %v1356, %v1439
        %v1494 = vsel %vm968, %v1357, %v1441
        %v1496 = vsel %vm968, %v1358, %v1443
        %v1498 = vsel %vm968, %v1359, %v1445
        %v1500 = vsel %vm968, %v1360, %v1447
        %vm1501 = vcmask 261120
        %v1503 = vsel %vm1501, %v1486, %v1470
        %v1505 = vsel %vm1501, %v1488, %v1472
        %v1507 = vsel %vm1501, %v1490, %v1474
        %v1509 = vsel %vm1501, %v1492, %v1476
        %v1511 = vsel %vm1501, %v1494, %v1478
        %v1513 = vsel %vm1501, %v1496, %v1480
        %v1515 = vsel %vm1501, %v1498, %v1482
        %v1517 = vsel %vm1501, %v1500, %v1484
        %v1518 = vld [vmem:[%s3] sm:$0xf]
        %v1519 = vld [vmem:[%s3 + $0x4] sm:$0xf]
        %v1520 = vld [vmem:[%s3 + $0x8] sm:$0xf]
        %v1521 = vld [vmem:[%s3 + $0xc] sm:$0xf]
        %v1522 = vld [vmem:[%s3 + $0x10] sm:$0xf]
        %v1523 = vld [vmem:[%s3 + $0x14] sm:$0xf]
        %v1530 = vunpack.c.l.b16 %v1518
        %v1531 = vunpack.c.l.b16 %v1519
        %v1532 = vunpack.c.l.b16 %v1520
        %v1533 = vunpack.c.l.b16 %v1521
        %v1534 = vunpack.c.l.b16 %v1522
        %v1535 = vunpack.c.l.b16 %v1523
        %v1536 = vpack.c.b16 %v1531, %v1530
        %v1537 = vpack.c.b16 %v1533, %v1532
        %v1538 = vpack.c.b16 %v1535, %v1534
        %vm1542 = vcmask 392192
        %v1543 = vsel %vm1542, %v1503, 0
        %v1545 = vsel %vm1542, %v1505, 0
        %v1547 = vsel %vm1542, %v1507, 0
        %v1549 = vsel %vm1542, %v1509, 0
        %v1551 = vsel %vm1542, %v1511, 0
        %v1553 = vsel %vm1542, %v1513, 0
        %v1555 = vsel %vm1542, %v1515, 0
        %v1557 = vsel %vm1542, %v1517, 0
        %1559 = vmatpush.bf16.msra.mxu0 0
        %1560 = vmatpush.bf16.msra.mxu0 0
        %1561 = vmatpush.bf16.msra.mxu0 0
        %1562 = vmatpush.bf16.msra.mxu0 0
        %1563 = vmatpush.bf16.msra.mxu0 0
        %1564 = vmatpush.bf16.msra.mxu0 %v1538
        %1565 = vmatpush.bf16.msra.mxu0 %v1537
        %1566 = vmatpush.bf16.msra.mxu0 %v1536
        %1567 = vmatmul.bf16.gmra.mxu0 %v1543
        %v1568 = vpop.f32.mrf.mxu0
        %v1569 = vadd.f32 0.0, %v1568
        %v1570 = vpop.f32.mrf.mxu0
        %v1571 = vadd.f32 0.0, %v1570
        %1572 = vmatmul.bf16.gmra.mxu0 %v1545
        %v1573 = vpop.f32.mrf.mxu0
        %v1574 = vadd.f32 0.0, %v1573
        %v1575 = vpop.f32.mrf.mxu0
        %v1576 = vadd.f32 0.0, %v1575
        %1577 = vmatmul.bf16.gmra.mxu0 %v1547
        %v1578 = vpop.f32.mrf.mxu0
        %v1579 = vadd.f32 0.0, %v1578
        %v1580 = vpop.f32.mrf.mxu0
        %v1581 = vadd.f32 0.0, %v1580
        %1582 = vmatmul.bf16.gmra.mxu0 %v1549
        %v1583 = vpop.f32.mrf.mxu0
        %v1584 = vadd.f32 0.0, %v1583
        %v1585 = vpop.f32.mrf.mxu0
        %v1586 = vadd.f32 0.0, %v1585
        %1587 = vmatmul.bf16.gmra.mxu0 %v1551
        %v1588 = vpop.f32.mrf.mxu0
        %v1589 = vadd.f32 0.0, %v1588
        %v1590 = vpop.f32.mrf.mxu0
        %v1591 = vadd.f32 0.0, %v1590
        %1592 = vmatmul.bf16.gmra.mxu0 %v1553
        %v1593 = vpop.f32.mrf.mxu0
        %v1594 = vadd.f32 0.0, %v1593
        %v1595 = vpop.f32.mrf.mxu0
        %v1596 = vadd.f32 0.0, %v1595
        %1597 = vmatmul.bf16.gmra.mxu0 %v1555
        %v1598 = vpop.f32.mrf.mxu0
        %v1599 = vadd.f32 0.0, %v1598
        %v1600 = vpop.f32.mrf.mxu0
        %v1601 = vadd.f32 0.0, %v1600
        %1602 = vmatmul.bf16.gmra.mxu0 %v1557
        %v1603 = vpop.f32.mrf.mxu0
        %v1604 = vadd.f32 0.0, %v1603
        %v1605 = vpop.f32.mrf.mxu0
        %v1606 = vadd.f32 0.0, %v1605
        %1607 = vdwg.mxu0
        %v1608 = vperm.slane %v641, 2
        %v1609 = vmul.f32 %v1569, %v1608
        %v1610 = vmul.f32 %v1571, %v1608
        %v1611 = vmul.f32 %v1574, %v1608
        %v1612 = vmul.f32 %v1576, %v1608
        %v1613 = vmul.f32 %v1579, %v1608
        %v1614 = vmul.f32 %v1581, %v1608
        %v1615 = vmul.f32 %v1584, %v1608
        %v1616 = vmul.f32 %v1586, %v1608
        %v1617 = vmul.f32 %v1589, %v1608
        %v1618 = vmul.f32 %v1591, %v1608
        %v1619 = vmul.f32 %v1594, %v1608
        %v1620 = vmul.f32 %v1596, %v1608
        %v1621 = vmul.f32 %v1599, %v1608
        %v1622 = vmul.f32 %v1601, %v1608
        %v1623 = vmul.f32 %v1604, %v1608
        %v1624 = vmul.f32 %v1606, %v1608
        %v1625 = vperm.slane %v641, 3
        %v1626 = vadd.f32 %v1609, %v1625
        %v1627 = vadd.f32 %v1610, %v1625
        %v1628 = vadd.f32 %v1611, %v1625
        %v1629 = vadd.f32 %v1612, %v1625
        %v1630 = vadd.f32 %v1613, %v1625
        %v1631 = vadd.f32 %v1614, %v1625
        %v1632 = vadd.f32 %v1615, %v1625
        %v1633 = vadd.f32 %v1616, %v1625
        %v1634 = vadd.f32 %v1617, %v1625
        %v1635 = vadd.f32 %v1618, %v1625
        %v1636 = vadd.f32 %v1619, %v1625
        %v1637 = vadd.f32 %v1620, %v1625
        %v1638 = vadd.f32 %v1621, %v1625
        %v1639 = vadd.f32 %v1622, %v1625
        %v1640 = vadd.f32 %v1623, %v1625
        %v1641 = vadd.f32 %v1624, %v1625
        %v1642 = vld [vmem:[%s732] sm:$0xf]
        %v1643 = vld [vmem:[%s732 + $0x4] sm:$0xf]
        %v1644 = vld [vmem:[%s732 + $0x8] sm:$0xf]
        %v1645 = vld [vmem:[%s732 + $0xc] sm:$0xf]
        %v1646 = vld [vmem:[%s732 + $0x10] sm:$0xf]
        %v1647 = vld [vmem:[%s732 + $0x14] sm:$0xf]
        %v1648 = vld [vmem:[%s732 + $0x18] sm:$0xf]
        %v1649 = vld [vmem:[%s732 + $0x1c] sm:$0xf]
        %v1650 = vld [vmem:[%s732 + $0x20] sm:$0xf]
        %v1651 = vld [vmem:[%s732 + $0x24] sm:$0xf]
        %v1652 = vld [vmem:[%s732 + $0x28] sm:$0xf]
        %v1653 = vld [vmem:[%s732 + $0x2c] sm:$0xf]
        %v1654 = vld [vmem:[%s732 + $0x30] sm:$0xf]
        %v1655 = vld [vmem:[%s732 + $0x34] sm:$0xf]
        %v1656 = vld [vmem:[%s732 + $0x38] sm:$0xf]
        %v1657 = vld [vmem:[%s732 + $0x3c] sm:$0xf]
        %v1658 = vld [vmem:[%s732 + $0x40] sm:$0x1]
        %v1659 = vld [vmem:[%s4] sm:$0xf]
        %v1677 = vunpack.c.l.b16 %v1642
        %v1678 = vunpack.c.l.b16 %v1643
        %v1679 = vunpack.c.l.b16 %v1644
        %v1680 = vunpack.c.l.b16 %v1645
        %v1681 = vunpack.c.l.b16 %v1646
        %v1682 = vunpack.c.l.b16 %v1647
        %v1683 = vunpack.c.l.b16 %v1648
        %v1684 = vunpack.c.l.b16 %v1649
        %v1685 = vunpack.c.l.b16 %v1650
        %v1686 = vunpack.c.l.b16 %v1651
        %v1687 = vunpack.c.l.b16 %v1652
        %v1688 = vunpack.c.l.b16 %v1653
        %v1689 = vunpack.c.l.b16 %v1654
        %v1690 = vunpack.c.l.b16 %v1655
        %v1691 = vunpack.c.l.b16 %v1656
        %v1692 = vunpack.c.l.b16 %v1657
        %v1693 = vunpack.c.l.b16 %v1658
        %v1694 = vpack.c.b16 %v1678, %v1677
        %v1695 = vpack.c.b16 %v1680, %v1679
        %v1696 = vpack.c.b16 %v1682, %v1681
        %v1697 = vpack.c.b16 %v1684, %v1683
        %v1698 = vpack.c.b16 %v1686, %v1685
        %v1699 = vpack.c.b16 %v1688, %v1687
        %v1700 = vpack.c.b16 %v1690, %v1689
        %v1701 = vpack.c.b16 %v1692, %v1691
        %v1702 = vpack.c.b16 %v1693, %v1693
        %v1704 = vshrl.u32 %v1694, 16
        %v1706 = vshll.u32 %v1694, 16
        %v1708 = vrot.slane %v1706, 1
        %v1709 = vor.u32 %v1704, %v1708
        %v1711 = vshll.u32 %v1695, 16
        %v1713 = vrot.slane %v1711, 1
        %v1714 = vsel %vm858, %v1709, %v1713
        %v1715 = vshrl.u32 %v1695, 16
        %v1717 = vor.u32 %v1715, %v1713
        %v1719 = vshll.u32 %v1696, 16
        %v1721 = vrot.slane %v1719, 1
        %v1722 = vsel %vm858, %v1717, %v1721
        %v1723 = vshrl.u32 %v1696, 16
        %v1725 = vor.u32 %v1723, %v1721
        %v1727 = vshll.u32 %v1697, 16
        %v1729 = vrot.slane %v1727, 1
        %v1730 = vsel %vm858, %v1725, %v1729
        %v1731 = vshrl.u32 %v1697, 16
        %v1733 = vor.u32 %v1731, %v1729
        %v1735 = vshll.u32 %v1698, 16
        %v1737 = vrot.slane %v1735, 1
        %v1738 = vsel %vm858, %v1733, %v1737
        %v1739 = vshrl.u32 %v1698, 16
        %v1741 = vor.u32 %v1739, %v1737
        %v1743 = vshll.u32 %v1699, 16
        %v1745 = vrot.slane %v1743, 1
        %v1746 = vsel %vm858, %v1741, %v1745
        %v1747 = vshrl.u32 %v1699, 16
        %v1749 = vor.u32 %v1747, %v1745
        %v1751 = vshll.u32 %v1700, 16
        %v1753 = vrot.slane %v1751, 1
        %v1754 = vsel %vm858, %v1749, %v1753
        %v1755 = vshrl.u32 %v1700, 16
        %v1757 = vor.u32 %v1755, %v1753
        %v1759 = vshll.u32 %v1701, 16
        %v1761 = vrot.slane %v1759, 1
        %v1762 = vsel %vm858, %v1757, %v1761
        %v1763 = vshrl.u32 %v1701, 16
        %v1765 = vor.u32 %v1763, %v1761
        %v1767 = vshll.u32 %v1702, 16
        %v1769 = vrot.slane %v1767, 1
        %v1770 = vsel %vm858, %v1765, %v1769
        %v1772 = vsel %vm948, %v1714, 0
        %v1775 = vsel %vm948, %v1722, 0
        %v1778 = vsel %vm948, %v1730, 0
        %v1781 = vsel %vm948, %v1738, 0
        %v1784 = vsel %vm948, %v1746, 0
        %v1787 = vsel %vm948, %v1754, 0
        %v1790 = vsel %vm948, %v1762, 0
        %v1793 = vsel %vm948, %v1770, 0
        %v1796 = vsel %vm1018, %v1659, 0
        %1798 = vmatpush.bf16.msra.mxu0 0
        %1799 = vmatpush.bf16.msra.mxu0 0
        %1800 = vmatpush.bf16.msra.mxu0 0
        %1801 = vmatpush.bf16.msra.mxu0 0
        %1802 = vmatpush.bf16.msra.mxu0 0
        %1803 = vmatpush.bf16.msra.mxu0 0
        %1804 = vmatpush.bf16.msra.mxu0 0
        %1805 = vmatpush.bf16.msra.mxu0 %v1796
        %1806 = vmatmul.bf16.gmra.mxu0 %v1772
        %v1807 = vpop.f32.mrf.mxu0
        %v1808 = vadd.f32 0.0, %v1807
        %v1809 = vpop.f32.mrf.mxu0
        %v1810 = vadd.f32 0.0, %v1809
        %1811 = vmatmul.bf16.gmra.mxu0 %v1775
        %v1812 = vpop.f32.mrf.mxu0
        %v1813 = vadd.f32 0.0, %v1812
        %v1814 = vpop.f32.mrf.mxu0
        %v1815 = vadd.f32 0.0, %v1814
        %1816 = vmatmul.bf16.gmra.mxu0 %v1778
        %v1817 = vpop.f32.mrf.mxu0
        %v1818 = vadd.f32 0.0, %v1817
        %v1819 = vpop.f32.mrf.mxu0
        %v1820 = vadd.f32 0.0, %v1819
        %1821 = vmatmul.bf16.gmra.mxu0 %v1781
        %v1822 = vpop.f32.mrf.mxu0
        %v1823 = vadd.f32 0.0, %v1822
        %v1824 = vpop.f32.mrf.mxu0
        %v1825 = vadd.f32 0.0, %v1824
        %1826 = vmatmul.bf16.gmra.mxu0 %v1784
        %v1827 = vpop.f32.mrf.mxu0
        %v1828 = vadd.f32 0.0, %v1827
        %v1829 = vpop.f32.mrf.mxu0
        %v1830 = vadd.f32 0.0, %v1829
        %1831 = vmatmul.bf16.gmra.mxu0 %v1787
        %v1832 = vpop.f32.mrf.mxu0
        %v1833 = vadd.f32 0.0, %v1832
        %v1834 = vpop.f32.mrf.mxu0
        %v1835 = vadd.f32 0.0, %v1834
        %1836 = vmatmul.bf16.gmra.mxu0 %v1790
        %v1837 = vpop.f32.mrf.mxu0
        %v1838 = vadd.f32 0.0, %v1837
        %v1839 = vpop.f32.mrf.mxu0
        %v1840 = vadd.f32 0.0, %v1839
        %1841 = vmatmul.bf16.gmra.mxu0 %v1793
        %v1842 = vpop.f32.mrf.mxu0
        %v1843 = vadd.f32 0.0, %v1842
        %v1844 = vpop.f32.mrf.mxu0
        %v1845 = vadd.f32 0.0, %v1844
        %1846 = vdwg.mxu0
        %v1847 = vadd.f32 %v1626, %v1808
        %v1848 = vadd.f32 %v1627, %v1810
        %v1849 = vadd.f32 %v1628, %v1813
        %v1850 = vadd.f32 %v1629, %v1815
        %v1851 = vadd.f32 %v1630, %v1818
        %v1852 = vadd.f32 %v1631, %v1820
        %v1853 = vadd.f32 %v1632, %v1823
        %v1854 = vadd.f32 %v1633, %v1825
        %v1855 = vadd.f32 %v1634, %v1828
        %v1856 = vadd.f32 %v1635, %v1830
        %v1857 = vadd.f32 %v1636, %v1833
        %v1858 = vadd.f32 %v1637, %v1835
        %v1859 = vadd.f32 %v1638, %v1838
        %v1860 = vadd.f32 %v1639, %v1840
        %v1861 = vadd.f32 %v1640, %v1843
        %v1862 = vadd.f32 %v1641, %v1845
        %v1863 = vmax.f32 %v1847, 0.0
        %v1864 = vmax.f32 %v1848, 0.0
        %v1865 = vmax.f32 %v1849, 0.0
        %v1866 = vmax.f32 %v1850, 0.0
        %v1867 = vmax.f32 %v1851, 0.0
        %v1868 = vmax.f32 %v1852, 0.0
        %v1869 = vmax.f32 %v1853, 0.0
        %v1870 = vmax.f32 %v1854, 0.0
        %v1871 = vmax.f32 %v1855, 0.0
        %v1872 = vmax.f32 %v1856, 0.0
        %v1873 = vmax.f32 %v1857, 0.0
        %v1874 = vmax.f32 %v1858, 0.0
        %v1875 = vmax.f32 %v1859, 0.0
        %v1876 = vmax.f32 %v1860, 0.0
        %v1877 = vmax.f32 %v1861, 0.0
        %v1878 = vmax.f32 %v1862, 0.0
        %1879 = vxpose.xlu0.b32.start [1/16] %v1863, 128
        %1880 = vxpose.xlu0.b32.cont [2/16] %v1864, 128
        %1881 = vxpose.xlu0.b32.cont [3/16] %v1865, 128
        %1882 = vxpose.xlu0.b32.cont [4/16] %v1866, 128
        %1883 = vxpose.xlu0.b32.cont [5/16] %v1867, 128
        %1884 = vxpose.xlu0.b32.cont [6/16] %v1868, 128
        %1885 = vxpose.xlu0.b32.cont [7/16] %v1869, 128
        %1886 = vxpose.xlu0.b32.cont [8/16] %v1870, 128
        %1887 = vxpose.xlu0.b32.cont [9/16] %v1871, 128
        %1888 = vxpose.xlu0.b32.cont [10/16] %v1872, 128
        %1889 = vxpose.xlu0.b32.cont [11/16] %v1873, 128
        %1890 = vxpose.xlu0.b32.cont [12/16] %v1874, 128
        %1891 = vxpose.xlu0.b32.cont [13/16] %v1875, 128
        %1892 = vxpose.xlu0.b32.cont [14/16] %v1876, 128
        %1893 = vxpose.xlu0.b32.cont [15/16] %v1877, 128
        %1894 = vxpose.xlu0.b32.end [16/16] %v1878, 128
        %v1895 = vpop.trf.xlu0
        %v1896 = vpop.trf.xlu0
        %v1897 = vpop.trf.xlu0
        %v1898 = vpop.trf.xlu0
        %v1899 = vpop.trf.xlu0
        %v1900 = vpop.trf.xlu0
        %v1901 = vpop.trf.xlu0
        %v1902 = vpop.trf.xlu0
        %v1903 = vpop.trf.xlu0
        %v1904 = vpop.trf.xlu0
        %v1905 = vpop.trf.xlu0
        %v1906 = vpop.trf.xlu0
        %v1907 = vpop.trf.xlu0
        %v1908 = vpop.trf.xlu0
        %v1909 = vpop.trf.xlu0
        %v1910 = vpop.trf.xlu0
        %1911 = vst [vmem:[%s631] sm:$0xff] %v1895
        %1912 = vst [vmem:[%s631 + $0x8] sm:$0xff] %v1896
        %s1913 = sand.u32 %s186, 1
        %s1914 = scalar_lea.sflag [#allocation7], %s1913
        %s1915 = sand.u32 %s186, 1
        %s1916 = smul.addr %s1915, 16
        %s1917 = scalar_lea.vmem [#allocation6], %s1916
        // Predicated region
        $region148: #{tpu_custom_call.1} parent=138 // pred_check
          %p1918 = pneg %p196
        $region149: #{tpu_custom_call.1} parent=138 // pred_check_branch
          %1920 = sbr.rel (%p1918) target = $region151
        $region150: #{tpu_custom_call.1} parent=138 // pred_region
          %1922 = vsyncadd %s1914, 0
          %s1923 = smul.addr %s24, 2
          %s1924 = sadd.s32 %s25, %s1923
          %s1925 = smul.addr %s1924, 8
          %s1926 = scalar_lea.hbm %s6, %s1925
          %s1927 = sshll.u32 %s1917, 4
          %s1928 = int_to_ptr.vmem [resolvable:$true] %s1927
          %s1929 = sshll.u32 %s1926, 4
          %s1930 = int_to_ptr.hbm [resolvable:$true] %s1929
          %1935 = dma.vmem_to_hbm [thread:$0]  %s1928, 256, %s1930, %s1914, 128, 128, 8
        $region151: #{tpu_custom_call.1} parent=138 // pred_fallthru
          _
      $region139: #{tpu_custom_call.1} parent=5 // pred_fallthru
        _
      %p1936 = scmp.le.s32.totalorder 2, %s15
      // Predicated region
      $region152: #{tpu_custom_call.1} parent=5 // pred_check
        %p1937 = pneg %p1936
      $region153: #{tpu_custom_call.1} parent=5 // pred_check_branch
        %1939 = sbr.rel (%p1937) target = $region155
      $region154: #{tpu_custom_call.1} parent=5 // pred_region
        %s1940 = ssub.s32 %s15, 2
        // Predicated region
        $region156: #{tpu_custom_call.1} parent=154 // pred_check
          %p1941 = pneg %p202
        $region157: #{tpu_custom_call.1} parent=154 // pred_check_branch
          %1943 = sbr.rel (%p1941) target = $region159
        $region158: #{tpu_custom_call.1} parent=154 // pred_region
          %s1944 = sand.u32 %s187, 1
          %s1945 = scalar_lea.sflag [#allocation7], %s1944
          %s1946 = sand.u32 %s187, 1
          %s1947 = smul.addr %s1946, 16
          %s1948 = scalar_lea.vmem [#allocation6], %s1947
          %1950 = dma.done %s1945, 256
        $region159: #{tpu_custom_call.1} parent=154 // pred_fallthru
          _
      $region155: #{tpu_custom_call.1} parent=5 // pred_fallthru
        _
    $region6: #{tpu_custom_call.1} parent=1 // loop_footer
      %s19 = sadd.s32 1, %s15
    $region7: #{tpu_custom_call.1} parent=1 // loop_footer_branch
      %14 = sbr.rel target = $region3
    $region8: #{tpu_custom_call.1} parent=1 // loop_exit
      _
    %1951 = vsyncpa [#allocation7], 1
    %s1952 = scalar_lea.sflag [#allocation7], 1
    %1953 = vsyncpa %s1952, 1

</llo_original>
